<compile_context>
chip_gen: v7x
topology: tpu7x:2x2x1
jax: 0.10.0
libtpu: 0.0.40
codegen_flags: <defaults>
</compile_context>

<pallas_src>
import functools
import math

import numpy as np
import jax
import jax.numpy as jnp
from jax.experimental import pallas as pl
from jax.experimental.pallas import tpu as pltpu


# Fixed geometry of this Net for 16x16 inputs, 3x3 valid convs, pool 2:
H0, H1, H2, HP = 16, 14, 12, 6   # input / conv1-out / conv2-out / pooled sizes


# ----------------------------------------------------------------------------
# Fused Pallas kernel: one grid step == TB samples, batch on the lane axis.
# ----------------------------------------------------------------------------
def _net_fused_kernel(x_ref, m1_ref, b1_ref, m2_ref, b2_ref, ws_ref, bf_ref,
                      out_ref, *, tb):
    f32 = jnp.float32
    x = x_ref[...]                                   # (Cin*16, 16*tb), col = w*tb + s

    # --- conv1 (3x3 valid): ONE banded matmul covering all 3 W-shifts --------
    rhs1 = jnp.concatenate(
        [x[:, dw * tb:(dw + H1) * tb] for dw in range(3)], axis=0)   # (3*Cin*16, 14*tb)
    y1 = jnp.dot(m1_ref[...], rhs1,
                 preferred_element_type=f32) + b1_ref[...]           # (F1*14, 14*tb)

    # --- conv2 (3x3 valid) ----------------------------------------------------
    rhs2 = jnp.concatenate(
        [y1[:, dw * tb:(dw + H2) * tb] for dw in range(3)], axis=0)  # (3*F1*14, 12*tb)
    y2 = jnp.dot(m2_ref[...], rhs2,
                 preferred_element_type=f32) + b2_ref[...]           # (F2*12, 12*tb)

    # --- MaxPool2d(2) ----------------------------------------------------------
    # W direction: pairwise max of neighbouring w-column blocks, stacked along
    # the sublane axis (row index = wp*F2*12 + f*12 + h).
    a = jnp.concatenate(
        [jnp.maximum(y2[:, (2 * wp) * tb:(2 * wp + 1) * tb],
                     y2[:, (2 * wp + 1) * tb:(2 * wp + 2) * tb])
         for wp in range(HP)], axis=0)                               # (6*F2*12, tb)
    # H direction: pairwise max of neighbouring rows, then ReLU. Rows that mix
    # channels / wp blocks are harmless: the folded fc matrix below has zero
    # columns at those rows.
    nr = a.shape[0]
    b = jnp.maximum(jnp.maximum(a[:nr - 1, :], a[1:, :]), 0.0)       # (575, tb)
    # TODO(synk): training-mode dropout (identity at inference) not emitted.

    # --- pool row-select + NCHW flatten + fc1 + fc2, all folded into ws ------
    z = jnp.dot(ws_ref[...], b,
                preferred_element_type=f32) + bf_ref[...]            # (10, tb)

    # --- log_softmax over the 10 classes (sublane axis) ------------------------
    zmax = jnp.max(z, axis=0, keepdims=True)
    sh = z - zmax
    lse = jnp.log(jnp.sum(jnp.exp(sh), axis=0, keepdims=True))
    out_ref[...] = sh - lse                                          # (10, tb)


# ----------------------------------------------------------------------------
# Forward wrapper: single pallas_call, batch-blocked "parallel" grid.
# ----------------------------------------------------------------------------
def net_forward(x_nchw, packed, tb=8):
    N, cin, h, w = x_nchw.shape
    assert h == H0 and w == H0, "weight packing hard-codes 16x16 inputs"
    tb = max(1, int(min(tb, N)))
    nb = -(-N // tb)                      # cdiv
    npad = nb * tb

    xp = x_nchw.astype(jnp.float32)
    if npad != N:
        xp = jnp.pad(xp, ((0, npad - N), (0, 0), (0, 0), (0, 0)))
    # (NB, TB, Cin, H, W) -> (NB, Cin, H, W, TB) -> (NB, Cin*H, W*TB):
    # each block is (Cin*H, W*TB) with column index = w*TB + sample.
    xp = xp.reshape(nb, tb, cin, h, w).transpose(0, 2, 3, 4, 1)
    xp = xp.reshape(nb, cin * h, w * tb)

    out = pl.pallas_call(
        functools.partial(_net_fused_kernel, tb=tb),
        out_shape=jax.ShapeDtypeStruct((nb, 10, tb), jnp.float32),
        grid=(nb,),
        in_specs=[
            pl.BlockSpec((None, cin * h, w * tb), lambda n: (n, 0, 0)),
            pl.BlockSpec(packed["m1"].shape, lambda n: (0, 0)),
            pl.BlockSpec(packed["b1"].shape, lambda n: (0, 0)),
            pl.BlockSpec(packed["m2"].shape, lambda n: (0, 0)),
            pl.BlockSpec(packed["b2"].shape, lambda n: (0, 0)),
            pl.BlockSpec(packed["ws"].shape, lambda n: (0, 0)),
            pl.BlockSpec(packed["bf"].shape, lambda n: (0, 0)),
        ],
        out_specs=pl.BlockSpec((None, 10, tb), lambda n: (n, 0, 0)),
        compiler_params=pltpu.CompilerParams(
            dimension_semantics=("parallel",)),   # >=2 blocks shard across v7x TCs
    )(xp, packed["m1"], packed["b1"], packed["m2"], packed["b2"],
      packed["ws"], packed["bf"])

    # (NB, 10, TB) -> (NB*TB, 10), drop batch padding.
    return out.transpose(0, 2, 1).reshape(nb * tb, 10)[:N]


# ----------------------------------------------------------------------------
# One-time host-side weight packing (outside the jitted forward).
# ----------------------------------------------------------------------------
def pack_params(params, cin, f1, f2, hidden):
    w1 = np.asarray(params["conv1_w"], np.float32)   # (F1, Cin, 3, 3)
    b1 = np.asarray(params["conv1_b"], np.float32)
    w2 = np.asarray(params["conv2_w"], np.float32)   # (F2, F1, 3, 3)
    b2 = np.asarray(params["conv2_b"], np.float32)
    fw1 = np.asarray(params["fc1_w"], np.float32)    # (hidden, F2*6*6)
    fb1 = np.asarray(params["fc1_b"], np.float32)
    fw2 = np.asarray(params["fc2_w"], np.float32)    # (10, hidden)
    fb2 = np.asarray(params["fc2_b"], np.float32)

    assert w1.shape == (f1, cin, 3, 3) and w2.shape == (f2, f1, 3, 3)
    assert fw1.shape == (hidden, f2 * HP * HP) and fw2.shape == (10, hidden)

    # Banded conv-as-matmul matrices with the three W-shifts merged along the
    # contraction (sublane) axis:
    #   m1[f*14+i, dw*Cin*16 + c*16 + i + dh] = w1[f, c, dh, dw]
    m1 = np.zeros((f1 * H1, 3 * cin * H0), np.float32)
    for dw in range(3):
        for dh in range(3):
            for i in range(H1):
                m1[np.arange(f1)[:, None] * H1 + i,
                   dw * cin * H0 + np.arange(cin)[None, :] * H0 + i + dh] = w1[:, :, dh, dw]
    m2 = np.zeros((f2 * H2, 3 * f1 * H1), np.float32)
    for dw in range(3):
        for dh in range(3):
            for i in range(H2):
                m2[np.arange(f2)[:, None] * H2 + i,
                   dw * f1 * H1 + np.arange(f1)[None, :] * H1 + i + dh] = w2[:, :, dh, dw]

    b1e = np.repeat(b1, H1).reshape(f1 * H1, 1)
    b2e = np.repeat(b2, H2).reshape(f2 * H2, 1)

    # fc1+fc2 fold (exact: no nonlinearity between them, dropout is identity at
    # inference), then fold the max-pool row selection + NCHW flatten
    # permutation into the same matrix. The kernel's contraction operand `b`
    # has rows r = wp*F2*12 + f*12 + 2*hp; every other row gets a zero column.
    w_fold = fw2 @ fw1                       # (10, F2*36)
    b_fold = fw2 @ fb1 + fb2                 # (10,)
    ws = np.zeros((10, HP * f2 * H2 - 1), np.float32)          # (10, 575)
    for f in range(f2):
        for hp in range(HP):
            for wp in range(HP):
                ws[:, wp * f2 * H2 + f * H2 + 2 * hp] = \
                    w_fold[:, f * HP * HP + hp * HP + wp]

    return {
        "m1": jnp.asarray(m1), "b1": jnp.asarray(b1e),
        "m2": jnp.asarray(m2), "b2": jnp.asarray(b2e),
        "ws": jnp.asarray(ws), "bf": jnp.asarray(b_fold.reshape(10, 1)),
    }


# ----------------------------------------------------------------------------
# Pure-JAX reference (for correctness checking only).
# ----------------------------------------------------------------------------
def reference_forward(x, params):
    hi = jax.lax.Precision.HIGHEST
    y1 = jax.lax.conv_general_dilated(
        x.astype(jnp.float32), params["conv1_w"], window_strides=(1, 1),
        padding="VALID", dimension_numbers=("NCHW", "OIHW", "NCHW"),
        precision=hi) + params["conv1_b"][None, :, None, None]
    y2 = jax.lax.conv_general_dilated(
        y1, params["conv2_w"], window_strides=(1, 1),
        padding="VALID", dimension_numbers=("NCHW", "OIHW", "NCHW"),
        precision=hi) + params["conv2_b"][None, :, None, None]
    pooled = jax.lax.reduce_window(y2, -jnp.inf, jax.lax.max,
                                   (1, 1, 2, 2), (1, 1, 2, 2), "VALID")
    act = jnp.maximum(pooled, 0.0)
    flat = act.reshape(act.shape[0], -1)
    h = jnp.dot(flat, params["fc1_w"].T, precision=hi) + params["fc1_b"][None, :]
    z = jnp.dot(h, params["fc2_w"].T, precision=hi) + params["fc2_b"][None, :]
    return jax.nn.log_softmax(z, axis=1)


# ----------------------------------------------------------------------------
# Deterministic parameter init (PyTorch-default-style uniform).
# ----------------------------------------------------------------------------
def init_params(key, cin, filters1, filters2, hidden_size, flat_dim):
    ks = jax.random.split(key, 8)

    def unif(k, shape, fan_in):
        bound = 1.0 / math.sqrt(fan_in)
        return jax.random.uniform(k, shape, jnp.float32, -bound, bound)

    return {
        "conv1_w": unif(ks[0], (filters1, cin, 3, 3), cin * 9),
        "conv1_b": unif(ks[1], (filters1,), cin * 9),
        "conv2_w": unif(ks[2], (filters2, filters1, 3, 3), filters1 * 9),
        "conv2_b": unif(ks[3], (filters2,), filters1 * 9),
        "fc1_w": unif(ks[4], (hidden_size, flat_dim), flat_dim),
        "fc1_b": unif(ks[5], (hidden_size,), flat_dim),
        "fc2_w": unif(ks[6], (10, hidden_size), hidden_size),
        "fc2_b": unif(ks[7], (10,), hidden_size),
    }


if __name__ == "__main__":
    CIN, FILTERS1, FILTERS2, HIDDEN = 4, 8, 8, 32
    FLAT_DIM = FILTERS2 * HP * HP    # 16 -> 14 -> 12 -> pool(2) -> 6

    key = jax.random.PRNGKey(0)
    kx, kp = jax.random.split(key)
    params = init_params(kp, CIN, FILTERS1, FILTERS2, HIDDEN, FLAT_DIM)
    packed = pack_params(params, CIN, FILTERS1, FILTERS2, HIDDEN)

    fwd = jax.jit(net_forward, static_argnames=("tb",))

    # (batch, batch-tile): second case exercises multi-block grid + batch padding.
    for n, tb in ((2, 8), (9, 4)):
        x = jax.random.normal(jax.random.fold_in(kx, n), (n, CIN, 16, 16),
                              dtype=jnp.float32)
        out = jax.block_until_ready(fwd(x, packed, tb=tb))
        assert out.shape == (n, 10), out.shape
        # log_softmax rows must (log-)normalize to ~0 and be finite
        row_lse = jax.nn.logsumexp(out, axis=1)
        assert bool(jnp.all(jnp.abs(row_lse) < 1e-3)), row_lse
        assert bool(jnp.all(jnp.isfinite(out)))
        # compare against the pure-JAX reference (loose tol for MXU precision)
        ref = jax.block_until_ready(reference_forward(x, params))
        max_err = float(jnp.max(jnp.abs(out - ref)))
        assert max_err < 5e-2, (n, tb, max_err)

    print("KERNEL_OK")
</pallas_src>

<mosaic_0001>
module attributes {stable_mosaic.version = 11 : i64} {
  func.func @_net_fused_kernel(%arg0: i32, %arg1: memref<1x64x32xf32, #tpu.memory_space<vmem>>, %arg2: memref<112x192xf32, #tpu.memory_space<vmem>>, %arg3: memref<112x1xf32, #tpu.memory_space<vmem>>, %arg4: memref<96x336xf32, #tpu.memory_space<vmem>>, %arg5: memref<96x1xf32, #tpu.memory_space<vmem>>, %arg6: memref<10x575xf32, #tpu.memory_space<vmem>>, %arg7: memref<10x1xf32, #tpu.memory_space<vmem>>, %arg8: memref<1x10x2xf32, #tpu.memory_space<vmem>>) attributes {dimension_semantics = [#tpu.dimension_semantics<parallel>], iteration_bounds = array<i64: 1>, scalar_prefetch = 0 : i64, scratch_operands = 0 : i64, tpu.core_type = #tpu.core_type<tc>, window_params = [{transform_indices = @transform_0, window_bounds = array<i64: 1, 64, 32>}, {pipeline_mode = #tpu.pipeline_mode<synchronous>, transform_indices = @transform_1, window_bounds = array<i64: 112, 192>}, {pipeline_mode = #tpu.pipeline_mode<synchronous>, transform_indices = @transform_2, window_bounds = array<i64: 112, 1>}, {pipeline_mode = #tpu.pipeline_mode<synchronous>, transform_indices = @transform_3, window_bounds = array<i64: 96, 336>}, {pipeline_mode = #tpu.pipeline_mode<synchronous>, transform_indices = @transform_4, window_bounds = array<i64: 96, 1>}, {pipeline_mode = #tpu.pipeline_mode<synchronous>, transform_indices = @transform_5, window_bounds = array<i64: 10, 575>}, {pipeline_mode = #tpu.pipeline_mode<synchronous>, transform_indices = @transform_6, window_bounds = array<i64: 10, 1>}, {transform_indices = @transform_7, window_bounds = array<i64: 1, 10, 2>}]} {
    %c0 = arith.constant 0 : index
    %c0_0 = arith.constant 0 : index
    %c0_1 = arith.constant 0 : index
    %0 = vector.load %arg1[%c0, %c0_0, %c0_1] : memref<1x64x32xf32, #tpu.memory_space<vmem>>, vector<1x64x32xf32>
    %1 = vector.shape_cast %0 : vector<1x64x32xf32> to vector<64x32xf32>
    %2 = vector.extract_strided_slice %1 {offsets = [0, 0], sizes = [64, 28], strides = [1, 1]} : vector<64x32xf32> to vector<64x28xf32>
    %3 = vector.extract_strided_slice %1 {offsets = [0, 2], sizes = [64, 28], strides = [1, 1]} : vector<64x32xf32> to vector<64x28xf32>
    %4 = vector.extract_strided_slice %1 {offsets = [0, 4], sizes = [64, 28], strides = [1, 1]} : vector<64x32xf32> to vector<64x28xf32>
    %5 = tpu.concatenate %2, %3, %4 in 0 : vector<64x28xf32>, vector<64x28xf32>, vector<64x28xf32> -> vector<192x28xf32>
    %c0_2 = arith.constant 0 : index
    %c0_3 = arith.constant 0 : index
    %6 = vector.load %arg2[%c0_2, %c0_3] : memref<112x192xf32, #tpu.memory_space<vmem>>, vector<112x192xf32>
    %cst = arith.constant dense<0.000000e+00> : vector<112x28xf32>
    %7 = tpu.matmul %6, %5, %cst {dimension_numbers = #tpu.dot_dimension_numbers<[1], [0], [0], [1], [0, 0, 1, 1], [], []>} : vector<112x192xf32>, vector<192x28xf32>, vector<112x28xf32> -> vector<112x28xf32>
    %c0_4 = arith.constant 0 : index
    %c0_5 = arith.constant 0 : index
    %8 = vector.load %arg3[%c0_4, %c0_5] : memref<112x1xf32, #tpu.memory_space<vmem>>, vector<112x1xf32>
    %9 = vector.broadcast %8 : vector<112x1xf32> to vector<112x28xf32>
    %10 = arith.addf %7, %9 : vector<112x28xf32>
    %11 = vector.extract_strided_slice %10 {offsets = [0, 0], sizes = [112, 24], strides = [1, 1]} : vector<112x28xf32> to vector<112x24xf32>
    %12 = vector.extract_strided_slice %10 {offsets = [0, 2], sizes = [112, 24], strides = [1, 1]} : vector<112x28xf32> to vector<112x24xf32>
    %13 = vector.extract_strided_slice %10 {offsets = [0, 4], sizes = [112, 24], strides = [1, 1]} : vector<112x28xf32> to vector<112x24xf32>
    %14 = tpu.concatenate %11, %12, %13 in 0 : vector<112x24xf32>, vector<112x24xf32>, vector<112x24xf32> -> vector<336x24xf32>
    %c0_6 = arith.constant 0 : index
    %c0_7 = arith.constant 0 : index
    %15 = vector.load %arg4[%c0_6, %c0_7] : memref<96x336xf32, #tpu.memory_space<vmem>>, vector<96x336xf32>
    %cst_8 = arith.constant dense<0.000000e+00> : vector<96x24xf32>
    %16 = tpu.matmul %15, %14, %cst_8 {dimension_numbers = #tpu.dot_dimension_numbers<[1], [0], [0], [1], [0, 0, 1, 1], [], []>} : vector<96x336xf32>, vector<336x24xf32>, vector<96x24xf32> -> vector<96x24xf32>
    %c0_9 = arith.constant 0 : index
    %c0_10 = arith.constant 0 : index
    %17 = vector.load %arg5[%c0_9, %c0_10] : memref<96x1xf32, #tpu.memory_space<vmem>>, vector<96x1xf32>
    %18 = vector.broadcast %17 : vector<96x1xf32> to vector<96x24xf32>
    %19 = arith.addf %16, %18 : vector<96x24xf32>
    %20 = vector.extract_strided_slice %19 {offsets = [0, 0], sizes = [96, 2], strides = [1, 1]} : vector<96x24xf32> to vector<96x2xf32>
    %21 = vector.extract_strided_slice %19 {offsets = [0, 2], sizes = [96, 2], strides = [1, 1]} : vector<96x24xf32> to vector<96x2xf32>
    %22 = arith.maximumf %20, %21 : vector<96x2xf32>
    %23 = vector.extract_strided_slice %19 {offsets = [0, 4], sizes = [96, 2], strides = [1, 1]} : vector<96x24xf32> to vector<96x2xf32>
    %24 = vector.extract_strided_slice %19 {offsets = [0, 6], sizes = [96, 2], strides = [1, 1]} : vector<96x24xf32> to vector<96x2xf32>
    %25 = arith.maximumf %23, %24 : vector<96x2xf32>
    %26 = vector.extract_strided_slice %19 {offsets = [0, 8], sizes = [96, 2], strides = [1, 1]} : vector<96x24xf32> to vector<96x2xf32>
    %27 = vector.extract_strided_slice %19 {offsets = [0, 10], sizes = [96, 2], strides = [1, 1]} : vector<96x24xf32> to vector<96x2xf32>
    %28 = arith.maximumf %26, %27 : vector<96x2xf32>
    %29 = vector.extract_strided_slice %19 {offsets = [0, 12], sizes = [96, 2], strides = [1, 1]} : vector<96x24xf32> to vector<96x2xf32>
    %30 = vector.extract_strided_slice %19 {offsets = [0, 14], sizes = [96, 2], strides = [1, 1]} : vector<96x24xf32> to vector<96x2xf32>
    %31 = arith.maximumf %29, %30 : vector<96x2xf32>
    %32 = vector.extract_strided_slice %19 {offsets = [0, 16], sizes = [96, 2], strides = [1, 1]} : vector<96x24xf32> to vector<96x2xf32>
    %33 = vector.extract_strided_slice %19 {offsets = [0, 18], sizes = [96, 2], strides = [1, 1]} : vector<96x24xf32> to vector<96x2xf32>
    %34 = arith.maximumf %32, %33 : vector<96x2xf32>
    %35 = vector.extract_strided_slice %19 {offsets = [0, 20], sizes = [96, 2], strides = [1, 1]} : vector<96x24xf32> to vector<96x2xf32>
    %36 = vector.extract_strided_slice %19 {offsets = [0, 22], sizes = [96, 2], strides = [1, 1]} : vector<96x24xf32> to vector<96x2xf32>
    %37 = arith.maximumf %35, %36 : vector<96x2xf32>
    %38 = tpu.concatenate %22, %25, %28, %31, %34, %37 in 0 : vector<96x2xf32>, vector<96x2xf32>, vector<96x2xf32>, vector<96x2xf32>, vector<96x2xf32>, vector<96x2xf32> -> vector<576x2xf32>
    %39 = vector.extract_strided_slice %38 {offsets = [0, 0], sizes = [575, 2], strides = [1, 1]} : vector<576x2xf32> to vector<575x2xf32>
    %40 = vector.extract_strided_slice %38 {offsets = [1, 0], sizes = [575, 2], strides = [1, 1]} : vector<576x2xf32> to vector<575x2xf32>
    %41 = arith.maximumf %39, %40 : vector<575x2xf32>
    %cst_11 = arith.constant 0.000000e+00 : f32
    %42 = vector.broadcast %cst_11 : f32 to vector<575x2xf32>
    %43 = arith.maximumf %41, %42 : vector<575x2xf32>
    %c0_12 = arith.constant 0 : index
    %c0_13 = arith.constant 0 : index
    %44 = vector.load %arg6[%c0_12, %c0_13] : memref<10x575xf32, #tpu.memory_space<vmem>>, vector<10x575xf32>
    %cst_14 = arith.constant dense<0.000000e+00> : vector<10x2xf32>
    %45 = tpu.matmul %44, %43, %cst_14 {dimension_numbers = #tpu.dot_dimension_numbers<[1], [0], [0], [1], [0, 0, 1, 1], [], []>} : vector<10x575xf32>, vector<575x2xf32>, vector<10x2xf32> -> vector<10x2xf32>
    %c0_15 = arith.constant 0 : index
    %c0_16 = arith.constant 0 : index
    %46 = vector.load %arg7[%c0_15, %c0_16] : memref<10x1xf32, #tpu.memory_space<vmem>>, vector<10x1xf32>
    %47 = vector.broadcast %46 : vector<10x1xf32> to vector<10x2xf32>
    %48 = arith.addf %45, %47 : vector<10x2xf32>
    %cst_17 = arith.constant dense<0xFF800000> : vector<2xf32>
    %49 = vector.multi_reduction <maximumf>, %48, %cst_17 [0] : vector<10x2xf32> to vector<2xf32>
    %50 = vector.shape_cast %49 : vector<2xf32> to vector<1x2xf32>
    %51 = vector.broadcast %50 : vector<1x2xf32> to vector<10x2xf32>
    %52 = arith.subf %48, %51 : vector<10x2xf32>
    %53 = math.exp %52 : vector<10x2xf32>
    %cst_18 = arith.constant dense<0.000000e+00> : vector<2xf32>
    %54 = vector.multi_reduction <add>, %53, %cst_18 [0] : vector<10x2xf32> to vector<2xf32>
    %55 = vector.shape_cast %54 : vector<2xf32> to vector<1x2xf32>
    %56 = math.log %55 : vector<1x2xf32>
    %57 = vector.broadcast %56 : vector<1x2xf32> to vector<10x2xf32>
    %58 = arith.subf %52, %57 : vector<10x2xf32>
    %c0_19 = arith.constant 0 : index
    %c0_20 = arith.constant 0 : index
    %c0_21 = arith.constant 0 : index
    %59 = vector.load %arg8[%c0_19, %c0_20, %c0_21] : memref<1x10x2xf32, #tpu.memory_space<vmem>>, vector<1x10x2xf32>
    %60 = vector.shape_cast %59 : vector<1x10x2xf32> to vector<10x2xf32>
    %61 = vector.shape_cast %58 : vector<10x2xf32> to vector<1x10x2xf32>
    tpu.vector_store %arg8[%c0_19, %c0_20, %c0_21], %61 {strides = array<i32>} : memref<1x10x2xf32, #tpu.memory_space<vmem>>, vector<1x10x2xf32>,
    return
  }
  func.func @transform_0(%arg0: i32) -> (i32, i32, i32) {
    %c0_i32 = arith.constant 0 : i32
    %c0_i32_0 = arith.constant 0 : i32
    %c0_i32_1 = arith.constant 0 : i32
    return %arg0, %c0_i32, %c0_i32_0 : i32, i32, i32
  }
  func.func @transform_1(%arg0: i32) -> (i32, i32) {
    %c0_i32 = arith.constant 0 : i32
    %c0_i32_0 = arith.constant 0 : i32
    %c0_i32_1 = arith.constant 0 : i32
    return %c0_i32, %c0_i32_0 : i32, i32
  }
  func.func @transform_2(%arg0: i32) -> (i32, i32) {
    %c0_i32 = arith.constant 0 : i32
    %c0_i32_0 = arith.constant 0 : i32
    %c0_i32_1 = arith.constant 0 : i32
    return %c0_i32, %c0_i32_0 : i32, i32
  }
  func.func @transform_3(%arg0: i32) -> (i32, i32) {
    %c0_i32 = arith.constant 0 : i32
    %c0_i32_0 = arith.constant 0 : i32
    %c0_i32_1 = arith.constant 0 : i32
    return %c0_i32, %c0_i32_0 : i32, i32
  }
  func.func @transform_4(%arg0: i32) -> (i32, i32) {
    %c0_i32 = arith.constant 0 : i32
    %c0_i32_0 = arith.constant 0 : i32
    %c0_i32_1 = arith.constant 0 : i32
    return %c0_i32, %c0_i32_0 : i32, i32
  }
  func.func @transform_5(%arg0: i32) -> (i32, i32) {
    %c0_i32 = arith.constant 0 : i32
    %c0_i32_0 = arith.constant 0 : i32
    %c0_i32_1 = arith.constant 0 : i32
    return %c0_i32, %c0_i32_0 : i32, i32
  }
  func.func @transform_6(%arg0: i32) -> (i32, i32) {
    %c0_i32 = arith.constant 0 : i32
    %c0_i32_0 = arith.constant 0 : i32
    %c0_i32_1 = arith.constant 0 : i32
    return %c0_i32, %c0_i32_0 : i32, i32
  }
  func.func @transform_7(%arg0: i32) -> (i32, i32, i32) {
    %c0_i32 = arith.constant 0 : i32
    %c0_i32_0 = arith.constant 0 : i32
    %c0_i32_1 = arith.constant 0 : i32
    return %arg0, %c0_i32, %c0_i32_0 : i32, i32, i32
  }
}

</mosaic_0001>

<llo_original>
// kernel: net_forward.1
$region0: #{net_forward.1}
  #allocation0 [shape = 'u32[]', space=smem, size = 0x4, offset = 0x4, fixed_abs, tag = 'smem constant byte address 0x4 - core index']
  #allocation1 [shape = 'u32[144,128]{1,0:T(1,128)}', space=vmem, size = 0x12000, scoped, tag = 'internal scratch']
  %s0 = inlined_call_operand.vmem [shape: f32[1,64,32], index: 0, kind: input, shape index: {}]
  %s1 = inlined_call_operand.vmem [shape: f32[112,192], index: 1, kind: input, shape index: {}]
  %s2 = inlined_call_operand.vmem [shape: f32[112,1], index: 2, kind: input, shape index: {}]
  %s3 = inlined_call_operand.vmem [shape: f32[96,336], index: 3, kind: input, shape index: {}]
  %s4 = inlined_call_operand.vmem [shape: f32[96,1], index: 4, kind: input, shape index: {}]
  %s5 = inlined_call_operand.vmem [shape: f32[10,575], index: 5, kind: input, shape index: {}]
  %s6 = inlined_call_operand.vmem [shape: f32[10,1], index: 6, kind: input, shape index: {}]
  %s7 = inlined_call_operand.vmem [shape: f32[1,10,2], index: 7, kind: output, shape index: {}]
  %s8 = sld [smem:[#allocation0]]
  $region38: #{net_forward.1} parent=0
    _
  %s10 = ssub.s32 1, %s8
  %s11 = scalar_select 0, %s10, %s8
  // Predicated region
  $region2: #{net_forward.1} parent=0 // pred_check
    _
  $region3: #{net_forward.1} parent=0 // pred_check_branch
    %13 = sbr.rel (0) target = $region5
  $region4: #{net_forward.1} parent=0 // pred_region
    _
  $region5: #{net_forward.1} parent=0 // pred_fallthru
    _
  // Predicated region
  $region6: #{net_forward.1} parent=0 // pred_check
    _
  $region7: #{net_forward.1} parent=0 // pred_check_branch
    %15 = sbr.rel (0) target = $region9
  $region8: #{net_forward.1} parent=0 // pred_region
    _
  $region9: #{net_forward.1} parent=0 // pred_fallthru
    _
  // Predicated region
  $region10: #{net_forward.1} parent=0 // pred_check
    _
  $region11: #{net_forward.1} parent=0 // pred_check_branch
    %17 = sbr.rel (0) target = $region13
  $region12: #{net_forward.1} parent=0 // pred_region
    _
  $region13: #{net_forward.1} parent=0 // pred_fallthru
    _
  // Predicated region
  $region14: #{net_forward.1} parent=0 // pred_check
    _
  $region15: #{net_forward.1} parent=0 // pred_check_branch
    %19 = sbr.rel (0) target = $region17
  $region16: #{net_forward.1} parent=0 // pred_region
    _
  $region17: #{net_forward.1} parent=0 // pred_fallthru
    _
  // Predicated region
  $region18: #{net_forward.1} parent=0 // pred_check
    _
  $region19: #{net_forward.1} parent=0 // pred_check_branch
    %21 = sbr.rel (0) target = $region21
  $region20: #{net_forward.1} parent=0 // pred_region
    _
  $region21: #{net_forward.1} parent=0 // pred_fallthru
    _
  // Predicated region
  $region22: #{net_forward.1} parent=0 // pred_check
    _
  $region23: #{net_forward.1} parent=0 // pred_check_branch
    %23 = sbr.rel (0) target = $region25
  $region24: #{net_forward.1} parent=0 // pred_region
    _
  $region25: #{net_forward.1} parent=0 // pred_fallthru
    _
  // Predicated region
  $region26: #{net_forward.1} parent=0 // pred_check
    _
  $region27: #{net_forward.1} parent=0 // pred_check_branch
    %25 = sbr.rel (0) target = $region29
  $region28: #{net_forward.1} parent=0 // pred_region
    _
  $region29: #{net_forward.1} parent=0 // pred_fallthru
    _
  %v26 = vld [vmem:[%s0] sm:$0xff]
  %v27 = vld [vmem:[%s0 + $0x8] sm:$0xff]
  %v28 = vld [vmem:[%s0 + $0x10] sm:$0xff]
  %v29 = vld [vmem:[%s0 + $0x18] sm:$0xff]
  %v30 = vld [vmem:[%s0 + $0x20] sm:$0xff]
  %v31 = vld [vmem:[%s0 + $0x28] sm:$0xff]
  %v32 = vld [vmem:[%s0 + $0x30] sm:$0xff]
  %v33 = vld [vmem:[%s0 + $0x38] sm:$0xff]
  %42 = vrot.lane.b32.xlu0 %v26, 126
  %v43 = vpop.permute.xlu0 %42
  %44 = vrot.lane.b32.xlu0 %v27, 126
  %v45 = vpop.permute.xlu0 %44
  %46 = vrot.lane.b32.xlu0 %v28, 126
  %v47 = vpop.permute.xlu0 %46
  %48 = vrot.lane.b32.xlu0 %v29, 126
  %v49 = vpop.permute.xlu0 %48
  %50 = vrot.lane.b32.xlu0 %v30, 126
  %v51 = vpop.permute.xlu0 %50
  %52 = vrot.lane.b32.xlu0 %v31, 126
  %v53 = vpop.permute.xlu0 %52
  %54 = vrot.lane.b32.xlu0 %v32, 126
  %v55 = vpop.permute.xlu0 %54
  %56 = vrot.lane.b32.xlu0 %v33, 126
  %v57 = vpop.permute.xlu0 %56
  %66 = vrot.lane.b32.xlu0 %v26, 124
  %v67 = vpop.permute.xlu0 %66
  %68 = vrot.lane.b32.xlu0 %v27, 124
  %v69 = vpop.permute.xlu0 %68
  %70 = vrot.lane.b32.xlu0 %v28, 124
  %v71 = vpop.permute.xlu0 %70
  %72 = vrot.lane.b32.xlu0 %v29, 124
  %v73 = vpop.permute.xlu0 %72
  %74 = vrot.lane.b32.xlu0 %v30, 124
  %v75 = vpop.permute.xlu0 %74
  %76 = vrot.lane.b32.xlu0 %v31, 124
  %v77 = vpop.permute.xlu0 %76
  %78 = vrot.lane.b32.xlu0 %v32, 124
  %v79 = vpop.permute.xlu0 %78
  %80 = vrot.lane.b32.xlu0 %v33, 124
  %v81 = vpop.permute.xlu0 %80
  %v90 = vld [vmem:[%s1] sm:$0xff]
  %v91 = vld [vmem:[%s1 + $0x8] sm:$0xff]
  %v92 = vld [vmem:[%s1 + $0x10] sm:$0xff]
  %v93 = vld [vmem:[%s1 + $0x18] sm:$0xff]
  %v94 = vld [vmem:[%s1 + $0x20] sm:$0xff]
  %v95 = vld [vmem:[%s1 + $0x28] sm:$0xff]
  %v96 = vld [vmem:[%s1 + $0x30] sm:$0xff]
  %v97 = vld [vmem:[%s1 + $0x38] sm:$0xff]
  %v98 = vld [vmem:[%s1 + $0x40] sm:$0xff]
  %v99 = vld [vmem:[%s1 + $0x48] sm:$0xff]
  %v100 = vld [vmem:[%s1 + $0x50] sm:$0xff]
  %v101 = vld [vmem:[%s1 + $0x58] sm:$0xff]
  %v102 = vld [vmem:[%s1 + $0x60] sm:$0xff]
  %v103 = vld [vmem:[%s1 + $0x68] sm:$0xff]
  %v104 = vld [vmem:[%s1 + $0x70] sm:$0xff]
  %v105 = vld [vmem:[%s1 + $0x78] sm:$0xff]
  %v106 = vld [vmem:[%s1 + $0x80] sm:$0xff]
  %v107 = vld [vmem:[%s1 + $0x88] sm:$0xff]
  %v108 = vld [vmem:[%s1 + $0x90] sm:$0xff]
  %v109 = vld [vmem:[%s1 + $0x98] sm:$0xff]
  %v110 = vld [vmem:[%s1 + $0xa0] sm:$0xff]
  %v111 = vld [vmem:[%s1 + $0xa8] sm:$0xff]
  %v112 = vld [vmem:[%s1 + $0xb0] sm:$0xff]
  %v113 = vld [vmem:[%s1 + $0xb8] sm:$0xff]
  %v114 = vld [vmem:[%s1 + $0xc0] sm:$0xff]
  %v115 = vld [vmem:[%s1 + $0xc8] sm:$0xff]
  %v116 = vld [vmem:[%s1 + $0xd0] sm:$0xff]
  %v117 = vld [vmem:[%s1 + $0xd8] sm:$0xff]
  %v118 = vld [vmem:[%s2] sm:$0xff]
  %v119 = vld [vmem:[%s2 + $0x8] sm:$0xff]
  %v120 = vld [vmem:[%s2 + $0x10] sm:$0xff]
  %v121 = vld [vmem:[%s2 + $0x18] sm:$0xff]
  %v122 = vld [vmem:[%s2 + $0x20] sm:$0xff]
  %v123 = vld [vmem:[%s2 + $0x28] sm:$0xff]
  %v124 = vld [vmem:[%s2 + $0x30] sm:$0xff]
  %v125 = vld [vmem:[%s2 + $0x38] sm:$0xff]
  %v126 = vld [vmem:[%s2 + $0x40] sm:$0xff]
  %v127 = vld [vmem:[%s2 + $0x48] sm:$0xff]
  %v128 = vld [vmem:[%s2 + $0x50] sm:$0xff]
  %v129 = vld [vmem:[%s2 + $0x58] sm:$0xff]
  %v130 = vld [vmem:[%s2 + $0x60] sm:$0xff]
  %v131 = vld [vmem:[%s2 + $0x68] sm:$0xff]
  %133 = vset.pattern.permute.xlu0 0
  %134 = vperm.xlu0 %133, %v118
  %v135 = vpop.permute.xlu0 %134
  %138 = vset.pattern.permute.xlu0 0
  %139 = vperm.xlu0 %138, %v119
  %v140 = vpop.permute.xlu0 %139
  %143 = vset.pattern.permute.xlu0 0
  %144 = vperm.xlu0 %143, %v120
  %v145 = vpop.permute.xlu0 %144
  %148 = vset.pattern.permute.xlu0 0
  %149 = vperm.xlu0 %148, %v121
  %v150 = vpop.permute.xlu0 %149
  %153 = vset.pattern.permute.xlu0 0
  %154 = vperm.xlu0 %153, %v122
  %v155 = vpop.permute.xlu0 %154
  %158 = vset.pattern.permute.xlu0 0
  %159 = vperm.xlu0 %158, %v123
  %v160 = vpop.permute.xlu0 %159
  %163 = vset.pattern.permute.xlu0 0
  %164 = vperm.xlu0 %163, %v124
  %v165 = vpop.permute.xlu0 %164
  %168 = vset.pattern.permute.xlu0 0
  %169 = vperm.xlu0 %168, %v125
  %v170 = vpop.permute.xlu0 %169
  %173 = vset.pattern.permute.xlu0 0
  %174 = vperm.xlu0 %173, %v126
  %v175 = vpop.permute.xlu0 %174
  %178 = vset.pattern.permute.xlu0 0
  %179 = vperm.xlu0 %178, %v127
  %v180 = vpop.permute.xlu0 %179
  %183 = vset.pattern.permute.xlu0 0
  %184 = vperm.xlu0 %183, %v128
  %v185 = vpop.permute.xlu0 %184
  %188 = vset.pattern.permute.xlu0 0
  %189 = vperm.xlu0 %188, %v129
  %v190 = vpop.permute.xlu0 %189
  %193 = vset.pattern.permute.xlu0 0
  %194 = vperm.xlu0 %193, %v130
  %v195 = vpop.permute.xlu0 %194
  %198 = vset.pattern.permute.xlu0 0
  %199 = vperm.xlu0 %198, %v131
  %v200 = vpop.permute.xlu0 %199
  %vm202 = vcmask 523264
  %v204 = vsel %vm202, %v91, 0
  %v207 = vsel %vm202, %v93, 0
  %v210 = vsel %vm202, %v95, 0
  %v213 = vsel %vm202, %v97, 0
  %v216 = vsel %vm202, %v99, 0
  %v219 = vsel %vm202, %v101, 0
  %v222 = vsel %vm202, %v103, 0
  %v225 = vsel %vm202, %v105, 0
  %v228 = vsel %vm202, %v107, 0
  %v231 = vsel %vm202, %v109, 0
  %v234 = vsel %vm202, %v111, 0
  %v237 = vsel %vm202, %v113, 0
  %v240 = vsel %vm202, %v115, 0
  %v243 = vsel %vm202, %v117, 0
  %245 = vmatprep.subr.mxu0 0.0
  %246 = vmatpush1.msra.mxu0 %v26
  %247 = vmatprep.subr.mxu0 0.0
  %248 = vmatpush1.msra.mxu0 %v27
  %249 = vmatprep.subr.mxu0 0.0
  %250 = vmatpush1.msra.mxu0 %v28
  %251 = vmatprep.subr.mxu0 0.0
  %252 = vmatpush1.msra.mxu0 %v29
  %253 = vmatprep.subr.mxu0 0.0
  %254 = vmatpush1.msra.mxu0 %v30
  %255 = vmatprep.subr.mxu0 0.0
  %256 = vmatpush1.msra.mxu0 %v31
  %257 = vmatprep.subr.mxu0 0.0
  %258 = vmatpush1.msra.mxu0 %v32
  %259 = vmatprep.subr.mxu0 0.0
  %260 = vmatpush1.msra.mxu0 %v33
  %261 = vmatprep.subr.mxu0 0.0
  %262 = vmatpush1.msra.mxu0 %v43
  %263 = vmatprep.subr.mxu0 0.0
  %264 = vmatpush1.msra.mxu0 %v45
  %265 = vmatprep.subr.mxu0 0.0
  %266 = vmatpush1.msra.mxu0 %v47
  %267 = vmatprep.subr.mxu0 0.0
  %268 = vmatpush1.msra.mxu0 %v49
  %269 = vmatprep.subr.mxu0 0.0
  %270 = vmatpush1.msra.mxu0 %v51
  %271 = vmatprep.subr.mxu0 0.0
  %272 = vmatpush1.msra.mxu0 %v53
  %273 = vmatprep.subr.mxu0 0.0
  %274 = vmatpush1.msra.mxu0 %v55
  %275 = vmatprep.subr.mxu0 0.0
  %276 = vmatpush1.msra.mxu0 %v57
  %277 = vmatprep.subr.mxu0 0.0
  %278 = vmatpush1.msra.mxu0 %v67
  %279 = vmatprep.subr.mxu0 0.0
  %280 = vmatpush1.msra.mxu0 %v69
  %281 = vmatprep.subr.mxu0 0.0
  %282 = vmatpush1.msra.mxu0 %v71
  %283 = vmatprep.subr.mxu0 0.0
  %284 = vmatpush1.msra.mxu0 %v73
  %285 = vmatprep.subr.mxu0 0.0
  %286 = vmatpush1.msra.mxu0 %v75
  %287 = vmatprep.subr.mxu0 0.0
  %288 = vmatpush1.msra.mxu0 %v77
  %289 = vmatprep.subr.mxu0 0.0
  %290 = vmatpush1.msra.mxu0 %v79
  %291 = vmatprep.subr.mxu0 0.0
  %292 = vmatpush1.msra.mxu0 %v81
  %293 = vmatprep.subr.mxu0 0.0
  %294 = vmatpush1.msra.mxu0 0.0
  %295 = vmatprep.subr.mxu0 0.0
  %296 = vmatpush1.msra.mxu0 0.0
  %297 = vmatprep.subr.mxu0 0.0
  %298 = vmatpush1.msra.mxu0 0.0
  %299 = vmatprep.subr.mxu0 0.0
  %300 = vmatpush1.msra.mxu0 0.0
  %301 = vmatprep.subr.mxu0 0.0
  %302 = vmatpush1.msra.mxu0 0.0
  %303 = vmatprep.subr.mxu0 0.0
  %304 = vmatpush1.msra.mxu0 0.0
  %305 = vmatprep.subr.mxu0 0.0
  %306 = vmatpush1.msra.mxu0 0.0
  %307 = vmatprep.subr.mxu0 0.0
  %308 = vmatpush1.msra.mxu0 0.0
  %309 = vmatprep.mubr.f32.mxu0 %v204
  %310 = vmatmul.mubr.f32.gmra.mrb[0].mxu0 %v90
  %v311 = vpop.f32.mrb[0].mxu0
  %v312 = vadd.f32 %v135, %v311
  %v313 = vpop.f32.mrb[0].mxu0
  %314 = vmatprep.mubr.f32.mxu0 %v207
  %315 = vmatmul.mubr.f32.gmra.mrb[0].mxu0 %v92
  %v316 = vpop.f32.mrb[0].mxu0
  %v317 = vadd.f32 %v140, %v316
  %v318 = vpop.f32.mrb[0].mxu0
  %319 = vmatprep.mubr.f32.mxu0 %v210
  %320 = vmatmul.mubr.f32.gmra.mrb[0].mxu0 %v94
  %v321 = vpop.f32.mrb[0].mxu0
  %v322 = vadd.f32 %v145, %v321
  %v323 = vpop.f32.mrb[0].mxu0
  %324 = vmatprep.mubr.f32.mxu0 %v213
  %325 = vmatmul.mubr.f32.gmra.mrb[0].mxu0 %v96
  %v326 = vpop.f32.mrb[0].mxu0
  %v327 = vadd.f32 %v150, %v326
  %v328 = vpop.f32.mrb[0].mxu0
  %329 = vmatprep.mubr.f32.mxu0 %v216
  %330 = vmatmul.mubr.f32.gmra.mrb[0].mxu0 %v98
  %v331 = vpop.f32.mrb[0].mxu0
  %v332 = vadd.f32 %v155, %v331
  %v333 = vpop.f32.mrb[0].mxu0
  %334 = vmatprep.mubr.f32.mxu0 %v219
  %335 = vmatmul.mubr.f32.gmra.mrb[0].mxu0 %v100
  %v336 = vpop.f32.mrb[0].mxu0
  %v337 = vadd.f32 %v160, %v336
  %v338 = vpop.f32.mrb[0].mxu0
  %339 = vmatprep.mubr.f32.mxu0 %v222
  %340 = vmatmul.mubr.f32.gmra.mrb[0].mxu0 %v102
  %v341 = vpop.f32.mrb[0].mxu0
  %v342 = vadd.f32 %v165, %v341
  %v343 = vpop.f32.mrb[0].mxu0
  %344 = vmatprep.mubr.f32.mxu0 %v225
  %345 = vmatmul.mubr.f32.gmra.mrb[0].mxu0 %v104
  %v346 = vpop.f32.mrb[0].mxu0
  %v347 = vadd.f32 %v170, %v346
  %v348 = vpop.f32.mrb[0].mxu0
  %349 = vmatprep.mubr.f32.mxu0 %v228
  %350 = vmatmul.mubr.f32.gmra.mrb[0].mxu0 %v106
  %v351 = vpop.f32.mrb[0].mxu0
  %v352 = vadd.f32 %v175, %v351
  %v353 = vpop.f32.mrb[0].mxu0
  %354 = vmatprep.mubr.f32.mxu0 %v231
  %355 = vmatmul.mubr.f32.gmra.mrb[0].mxu0 %v108
  %v356 = vpop.f32.mrb[0].mxu0
  %v357 = vadd.f32 %v180, %v356
  %v358 = vpop.f32.mrb[0].mxu0
  %359 = vmatprep.mubr.f32.mxu0 %v234
  %360 = vmatmul.mubr.f32.gmra.mrb[0].mxu0 %v110
  %v361 = vpop.f32.mrb[0].mxu0
  %v362 = vadd.f32 %v185, %v361
  %v363 = vpop.f32.mrb[0].mxu0
  %364 = vmatprep.mubr.f32.mxu0 %v237
  %365 = vmatmul.mubr.f32.gmra.mrb[0].mxu0 %v112
  %v366 = vpop.f32.mrb[0].mxu0
  %v367 = vadd.f32 %v190, %v366
  %v368 = vpop.f32.mrb[0].mxu0
  %369 = vmatprep.mubr.f32.mxu0 %v240
  %370 = vmatmul.mubr.f32.gmra.mrb[0].mxu0 %v114
  %v371 = vpop.f32.mrb[0].mxu0
  %v372 = vadd.f32 %v195, %v371
  %v373 = vpop.f32.mrb[0].mxu0
  %374 = vmatprep.mubr.f32.mxu0 %v243
  %375 = vmatmul.mubr.f32.gmra.mrb[0].mxu0 %v116
  %v376 = vpop.f32.mrb[0].mxu0
  %v377 = vadd.f32 %v200, %v376
  %v378 = vpop.f32.mrb[0].mxu0
  %379 = vdwg.mxu0
  %394 = vrot.lane.b32.xlu0 %v312, 126
  %v395 = vpop.permute.xlu0 %394
  %396 = vrot.lane.b32.xlu0 %v317, 126
  %v397 = vpop.permute.xlu0 %396
  %398 = vrot.lane.b32.xlu0 %v322, 126
  %v399 = vpop.permute.xlu0 %398
  %400 = vrot.lane.b32.xlu0 %v327, 126
  %v401 = vpop.permute.xlu0 %400
  %402 = vrot.lane.b32.xlu0 %v332, 126
  %v403 = vpop.permute.xlu0 %402
  %404 = vrot.lane.b32.xlu0 %v337, 126
  %v405 = vpop.permute.xlu0 %404
  %406 = vrot.lane.b32.xlu0 %v342, 126
  %v407 = vpop.permute.xlu0 %406
  %408 = vrot.lane.b32.xlu0 %v347, 126
  %v409 = vpop.permute.xlu0 %408
  %410 = vrot.lane.b32.xlu0 %v352, 126
  %v411 = vpop.permute.xlu0 %410
  %412 = vrot.lane.b32.xlu0 %v357, 126
  %v413 = vpop.permute.xlu0 %412
  %414 = vrot.lane.b32.xlu0 %v362, 126
  %v415 = vpop.permute.xlu0 %414
  %416 = vrot.lane.b32.xlu0 %v367, 126
  %v417 = vpop.permute.xlu0 %416
  %418 = vrot.lane.b32.xlu0 %v372, 126
  %v419 = vpop.permute.xlu0 %418
  %420 = vrot.lane.b32.xlu0 %v377, 126
  %v421 = vpop.permute.xlu0 %420
  %436 = vrot.lane.b32.xlu0 %v312, 124
  %v437 = vpop.permute.xlu0 %436
  %438 = vrot.lane.b32.xlu0 %v317, 124
  %v439 = vpop.permute.xlu0 %438
  %440 = vrot.lane.b32.xlu0 %v322, 124
  %v441 = vpop.permute.xlu0 %440
  %442 = vrot.lane.b32.xlu0 %v327, 124
  %v443 = vpop.permute.xlu0 %442
  %444 = vrot.lane.b32.xlu0 %v332, 124
  %v445 = vpop.permute.xlu0 %444
  %446 = vrot.lane.b32.xlu0 %v337, 124
  %v447 = vpop.permute.xlu0 %446
  %448 = vrot.lane.b32.xlu0 %v342, 124
  %v449 = vpop.permute.xlu0 %448
  %450 = vrot.lane.b32.xlu0 %v347, 124
  %v451 = vpop.permute.xlu0 %450
  %452 = vrot.lane.b32.xlu0 %v352, 124
  %v453 = vpop.permute.xlu0 %452
  %454 = vrot.lane.b32.xlu0 %v357, 124
  %v455 = vpop.permute.xlu0 %454
  %456 = vrot.lane.b32.xlu0 %v362, 124
  %v457 = vpop.permute.xlu0 %456
  %458 = vrot.lane.b32.xlu0 %v367, 124
  %v459 = vpop.permute.xlu0 %458
  %460 = vrot.lane.b32.xlu0 %v372, 124
  %v461 = vpop.permute.xlu0 %460
  %462 = vrot.lane.b32.xlu0 %v377, 124
  %v463 = vpop.permute.xlu0 %462
  %v478 = vld [vmem:[%s3] sm:$0xff]
  %v479 = vld [vmem:[%s3 + $0x8] sm:$0xff]
  %v480 = vld [vmem:[%s3 + $0x10] sm:$0xff]
  %v481 = vld [vmem:[%s3 + $0x18] sm:$0xff]
  %v482 = vld [vmem:[%s3 + $0x20] sm:$0xff]
  %v483 = vld [vmem:[%s3 + $0x28] sm:$0xff]
  %v484 = vld [vmem:[%s3 + $0x30] sm:$0xff]
  %v485 = vld [vmem:[%s3 + $0x38] sm:$0xff]
  %v486 = vld [vmem:[%s3 + $0x40] sm:$0xff]
  %v487 = vld [vmem:[%s3 + $0x48] sm:$0xff]
  %v488 = vld [vmem:[%s3 + $0x50] sm:$0xff]
  %v489 = vld [vmem:[%s3 + $0x58] sm:$0xff]
  %v490 = vld [vmem:[%s3 + $0x60] sm:$0xff]
  %v491 = vld [vmem:[%s3 + $0x68] sm:$0xff]
  %v492 = vld [vmem:[%s3 + $0x70] sm:$0xff]
  %v493 = vld [vmem:[%s3 + $0x78] sm:$0xff]
  %v494 = vld [vmem:[%s3 + $0x80] sm:$0xff]
  %v495 = vld [vmem:[%s3 + $0x88] sm:$0xff]
  %v496 = vld [vmem:[%s3 + $0x90] sm:$0xff]
  %v497 = vld [vmem:[%s3 + $0x98] sm:$0xff]
  %v498 = vld [vmem:[%s3 + $0xa0] sm:$0xff]
  %v499 = vld [vmem:[%s3 + $0xa8] sm:$0xff]
  %v500 = vld [vmem:[%s3 + $0xb0] sm:$0xff]
  %v501 = vld [vmem:[%s3 + $0xb8] sm:$0xff]
  %v502 = vld [vmem:[%s3 + $0xc0] sm:$0xff]
  %v503 = vld [vmem:[%s3 + $0xc8] sm:$0xff]
  %v504 = vld [vmem:[%s3 + $0xd0] sm:$0xff]
  %v505 = vld [vmem:[%s3 + $0xd8] sm:$0xff]
  %v506 = vld [vmem:[%s3 + $0xe0] sm:$0xff]
  %v507 = vld [vmem:[%s3 + $0xe8] sm:$0xff]
  %v508 = vld [vmem:[%s3 + $0xf0] sm:$0xff]
  %v509 = vld [vmem:[%s3 + $0xf8] sm:$0xff]
  %v510 = vld [vmem:[%s3 + $0x100] sm:$0xff]
  %v511 = vld [vmem:[%s3 + $0x108] sm:$0xff]
  %v512 = vld [vmem:[%s3 + $0x110] sm:$0xff]
  %v513 = vld [vmem:[%s3 + $0x118] sm:$0xff]
  %v514 = vld [vmem:[%s4] sm:$0xff]
  %v515 = vld [vmem:[%s4 + $0x8] sm:$0xff]
  %v516 = vld [vmem:[%s4 + $0x10] sm:$0xff]
  %v517 = vld [vmem:[%s4 + $0x18] sm:$0xff]
  %v518 = vld [vmem:[%s4 + $0x20] sm:$0xff]
  %v519 = vld [vmem:[%s4 + $0x28] sm:$0xff]
  %v520 = vld [vmem:[%s4 + $0x30] sm:$0xff]
  %v521 = vld [vmem:[%s4 + $0x38] sm:$0xff]
  %v522 = vld [vmem:[%s4 + $0x40] sm:$0xff]
  %v523 = vld [vmem:[%s4 + $0x48] sm:$0xff]
  %v524 = vld [vmem:[%s4 + $0x50] sm:$0xff]
  %v525 = vld [vmem:[%s4 + $0x58] sm:$0xff]
  %527 = vset.pattern.permute.xlu0 0
  %528 = vperm.xlu0 %527, %v514
  %v529 = vpop.permute.xlu0 %528
  %532 = vset.pattern.permute.xlu0 0
  %533 = vperm.xlu0 %532, %v515
  %v534 = vpop.permute.xlu0 %533
  %537 = vset.pattern.permute.xlu0 0
  %538 = vperm.xlu0 %537, %v516
  %v539 = vpop.permute.xlu0 %538
  %542 = vset.pattern.permute.xlu0 0
  %543 = vperm.xlu0 %542, %v517
  %v544 = vpop.permute.xlu0 %543
  %547 = vset.pattern.permute.xlu0 0
  %548 = vperm.xlu0 %547, %v518
  %v549 = vpop.permute.xlu0 %548
  %552 = vset.pattern.permute.xlu0 0
  %553 = vperm.xlu0 %552, %v519
  %v554 = vpop.permute.xlu0 %553
  %557 = vset.pattern.permute.xlu0 0
  %558 = vperm.xlu0 %557, %v520
  %v559 = vpop.permute.xlu0 %558
  %562 = vset.pattern.permute.xlu0 0
  %563 = vperm.xlu0 %562, %v521
  %v564 = vpop.permute.xlu0 %563
  %567 = vset.pattern.permute.xlu0 0
  %568 = vperm.xlu0 %567, %v522
  %v569 = vpop.permute.xlu0 %568
  %572 = vset.pattern.permute.xlu0 0
  %573 = vperm.xlu0 %572, %v523
  %v574 = vpop.permute.xlu0 %573
  %577 = vset.pattern.permute.xlu0 0
  %578 = vperm.xlu0 %577, %v524
  %v579 = vpop.permute.xlu0 %578
  %582 = vset.pattern.permute.xlu0 0
  %583 = vperm.xlu0 %582, %v525
  %v584 = vpop.permute.xlu0 %583
  %vm586 = vcmask 654336
  %v588 = vsel %vm586, %v480, 0
  %v591 = vsel %vm586, %v483, 0
  %v594 = vsel %vm586, %v486, 0
  %v597 = vsel %vm586, %v489, 0
  %v600 = vsel %vm586, %v492, 0
  %v603 = vsel %vm586, %v495, 0
  %v606 = vsel %vm586, %v498, 0
  %v609 = vsel %vm586, %v501, 0
  %v612 = vsel %vm586, %v504, 0
  %v615 = vsel %vm586, %v507, 0
  %v618 = vsel %vm586, %v510, 0
  %v621 = vsel %vm586, %v513, 0
  %623 = vmatprep.subr.mxu0 0.0
  %624 = vmatpush1.msra.mxu0 %v312
  %625 = vmatprep.subr.mxu0 0.0
  %626 = vmatpush1.msra.mxu0 %v317
  %627 = vmatprep.subr.mxu0 0.0
  %628 = vmatpush1.msra.mxu0 %v322
  %629 = vmatprep.subr.mxu0 0.0
  %630 = vmatpush1.msra.mxu0 %v327
  %631 = vmatprep.subr.mxu0 0.0
  %632 = vmatpush1.msra.mxu0 %v332
  %633 = vmatprep.subr.mxu0 0.0
  %634 = vmatpush1.msra.mxu0 %v337
  %635 = vmatprep.subr.mxu0 0.0
  %636 = vmatpush1.msra.mxu0 %v342
  %637 = vmatprep.subr.mxu0 0.0
  %638 = vmatpush1.msra.mxu0 %v347
  %639 = vmatprep.subr.mxu0 0.0
  %640 = vmatpush1.msra.mxu0 %v352
  %641 = vmatprep.subr.mxu0 0.0
  %642 = vmatpush1.msra.mxu0 %v357
  %643 = vmatprep.subr.mxu0 0.0
  %644 = vmatpush1.msra.mxu0 %v362
  %645 = vmatprep.subr.mxu0 0.0
  %646 = vmatpush1.msra.mxu0 %v367
  %647 = vmatprep.subr.mxu0 0.0
  %648 = vmatpush1.msra.mxu0 %v372
  %649 = vmatprep.subr.mxu0 0.0
  %650 = vmatpush1.msra.mxu0 %v377
  %651 = vmatprep.subr.mxu0 0.0
  %652 = vmatpush1.msra.mxu0 %v395
  %653 = vmatprep.subr.mxu0 0.0
  %654 = vmatpush1.msra.mxu0 %v397
  %655 = vmatprep.subr.mxu0 0.0
  %656 = vmatpush1.msra.mxu0 %v399
  %657 = vmatprep.subr.mxu0 0.0
  %658 = vmatpush1.msra.mxu0 %v401
  %659 = vmatprep.subr.mxu0 0.0
  %660 = vmatpush1.msra.mxu0 %v403
  %661 = vmatprep.subr.mxu0 0.0
  %662 = vmatpush1.msra.mxu0 %v405
  %663 = vmatprep.subr.mxu0 0.0
  %664 = vmatpush1.msra.mxu0 %v407
  %665 = vmatprep.subr.mxu0 0.0
  %666 = vmatpush1.msra.mxu0 %v409
  %667 = vmatprep.subr.mxu0 0.0
  %668 = vmatpush1.msra.mxu0 %v411
  %669 = vmatprep.subr.mxu0 0.0
  %670 = vmatpush1.msra.mxu0 %v413
  %671 = vmatprep.subr.mxu0 0.0
  %672 = vmatpush1.msra.mxu0 %v415
  %673 = vmatprep.subr.mxu0 0.0
  %674 = vmatpush1.msra.mxu0 %v417
  %675 = vmatprep.subr.mxu0 0.0
  %676 = vmatpush1.msra.mxu0 %v419
  %677 = vmatprep.subr.mxu0 0.0
  %678 = vmatpush1.msra.mxu0 %v421
  %679 = vmatprep.subr.mxu0 0.0
  %680 = vmatpush1.msra.mxu0 %v437
  %681 = vmatprep.subr.mxu0 0.0
  %682 = vmatpush1.msra.mxu0 %v439
  %683 = vmatprep.subr.mxu0 0.0
  %684 = vmatpush1.msra.mxu0 %v441
  %685 = vmatprep.subr.mxu0 0.0
  %686 = vmatpush1.msra.mxu0 %v443
  %687 = vmatprep.mubr.f32.mxu0 %v479
  %688 = vmatmul.mubr.f32.gmra.mrb[0].mxu0 %v478
  %v689 = vpop.f32.mrb[0].mxu0
  %v690 = vadd.f32 %v529, %v689
  %v691 = vpop.f32.mrb[0].mxu0
  %692 = vmatprep.mubr.f32.mxu0 %v482
  %693 = vmatmul.mubr.f32.gmra.mrb[0].mxu0 %v481
  %v694 = vpop.f32.mrb[0].mxu0
  %v695 = vadd.f32 %v534, %v694
  %v696 = vpop.f32.mrb[0].mxu0
  %697 = vmatprep.mubr.f32.mxu0 %v485
  %698 = vmatmul.mubr.f32.gmra.mrb[0].mxu0 %v484
  %v699 = vpop.f32.mrb[0].mxu0
  %v700 = vadd.f32 %v539, %v699
  %v701 = vpop.f32.mrb[0].mxu0
  %702 = vmatprep.mubr.f32.mxu0 %v488
  %703 = vmatmul.mubr.f32.gmra.mrb[0].mxu0 %v487
  %v704 = vpop.f32.mrb[0].mxu0
  %v705 = vadd.f32 %v544, %v704
  %v706 = vpop.f32.mrb[0].mxu0
  %707 = vmatprep.mubr.f32.mxu0 %v491
  %708 = vmatmul.mubr.f32.gmra.mrb[0].mxu0 %v490
  %v709 = vpop.f32.mrb[0].mxu0
  %v710 = vadd.f32 %v549, %v709
  %v711 = vpop.f32.mrb[0].mxu0
  %712 = vmatprep.mubr.f32.mxu0 %v494
  %713 = vmatmul.mubr.f32.gmra.mrb[0].mxu0 %v493
  %v714 = vpop.f32.mrb[0].mxu0
  %v715 = vadd.f32 %v554, %v714
  %v716 = vpop.f32.mrb[0].mxu0
  %717 = vmatprep.mubr.f32.mxu0 %v497
  %718 = vmatmul.mubr.f32.gmra.mrb[0].mxu0 %v496
  %v719 = vpop.f32.mrb[0].mxu0
  %v720 = vadd.f32 %v559, %v719
  %v721 = vpop.f32.mrb[0].mxu0
  %722 = vmatprep.mubr.f32.mxu0 %v500
  %723 = vmatmul.mubr.f32.gmra.mrb[0].mxu0 %v499
  %v724 = vpop.f32.mrb[0].mxu0
  %v725 = vadd.f32 %v564, %v724
  %v726 = vpop.f32.mrb[0].mxu0
  %727 = vmatprep.mubr.f32.mxu0 %v503
  %728 = vmatmul.mubr.f32.gmra.mrb[0].mxu0 %v502
  %v729 = vpop.f32.mrb[0].mxu0
  %v730 = vadd.f32 %v569, %v729
  %v731 = vpop.f32.mrb[0].mxu0
  %732 = vmatprep.mubr.f32.mxu0 %v506
  %733 = vmatmul.mubr.f32.gmra.mrb[0].mxu0 %v505
  %v734 = vpop.f32.mrb[0].mxu0
  %v735 = vadd.f32 %v574, %v734
  %v736 = vpop.f32.mrb[0].mxu0
  %737 = vmatprep.mubr.f32.mxu0 %v509
  %738 = vmatmul.mubr.f32.gmra.mrb[0].mxu0 %v508
  %v739 = vpop.f32.mrb[0].mxu0
  %v740 = vadd.f32 %v579, %v739
  %v741 = vpop.f32.mrb[0].mxu0
  %742 = vmatprep.mubr.f32.mxu0 %v512
  %743 = vmatmul.mubr.f32.gmra.mrb[0].mxu0 %v511
  %v744 = vpop.f32.mrb[0].mxu0
  %v745 = vadd.f32 %v584, %v744
  %v746 = vpop.f32.mrb[0].mxu0
  %747 = vdwg.mxu0
  %748 = vmatprep.subr.mxu0 0.0
  %749 = vmatpush1.msra.mxu0 %v445
  %750 = vmatprep.subr.mxu0 0.0
  %751 = vmatpush1.msra.mxu0 %v447
  %752 = vmatprep.subr.mxu0 0.0
  %753 = vmatpush1.msra.mxu0 %v449
  %754 = vmatprep.subr.mxu0 0.0
  %755 = vmatpush1.msra.mxu0 %v451
  %756 = vmatprep.subr.mxu0 0.0
  %757 = vmatpush1.msra.mxu0 %v453
  %758 = vmatprep.subr.mxu0 0.0
  %759 = vmatpush1.msra.mxu0 %v455
  %760 = vmatprep.subr.mxu0 0.0
  %761 = vmatpush1.msra.mxu0 %v457
  %762 = vmatprep.subr.mxu0 0.0
  %763 = vmatpush1.msra.mxu0 %v459
  %764 = vmatprep.subr.mxu0 0.0
  %765 = vmatpush1.msra.mxu0 %v461
  %766 = vmatprep.subr.mxu0 0.0
  %767 = vmatpush1.msra.mxu0 %v463
  %768 = vmatprep.subr.mxu0 0.0
  %769 = vmatpush1.msra.mxu0 0.0
  %770 = vmatprep.subr.mxu0 0.0
  %771 = vmatpush1.msra.mxu0 0.0
  %772 = vmatprep.subr.mxu0 0.0
  %773 = vmatpush1.msra.mxu0 0.0
  %774 = vmatprep.subr.mxu0 0.0
  %775 = vmatpush1.msra.mxu0 0.0
  %776 = vmatprep.subr.mxu0 0.0
  %777 = vmatpush1.msra.mxu0 0.0
  %778 = vmatprep.subr.mxu0 0.0
  %779 = vmatpush1.msra.mxu0 0.0
  %780 = vmatprep.subr.mxu0 0.0
  %781 = vmatpush1.msra.mxu0 0.0
  %782 = vmatprep.subr.mxu0 0.0
  %783 = vmatpush1.msra.mxu0 0.0
  %784 = vmatprep.subr.mxu0 0.0
  %785 = vmatpush1.msra.mxu0 0.0
  %786 = vmatprep.subr.mxu0 0.0
  %787 = vmatpush1.msra.mxu0 0.0
  %788 = vmatprep.subr.mxu0 0.0
  %789 = vmatpush1.msra.mxu0 0.0
  %790 = vmatprep.subr.mxu0 0.0
  %791 = vmatpush1.msra.mxu0 0.0
  %792 = vmatprep.subr.mxu0 0.0
  %793 = vmatpush1.msra.mxu0 0.0
  %794 = vmatprep.subr.mxu0 0.0
  %795 = vmatpush1.msra.mxu0 0.0
  %796 = vmatprep.subr.mxu0 0.0
  %797 = vmatpush1.msra.mxu0 0.0
  %798 = vmatprep.subr.mxu0 0.0
  %799 = vmatpush1.msra.mxu0 0.0
  %800 = vmatprep.subr.mxu0 0.0
  %801 = vmatpush1.msra.mxu0 0.0
  %802 = vmatprep.subr.mxu0 0.0
  %803 = vmatpush1.msra.mxu0 0.0
  %804 = vmatprep.subr.mxu0 0.0
  %805 = vmatpush1.msra.mxu0 0.0
  %806 = vmatprep.subr.mxu0 0.0
  %807 = vmatpush1.msra.mxu0 0.0
  %808 = vmatprep.subr.mxu0 0.0
  %809 = vmatpush1.msra.mxu0 0.0
  %810 = vmatprep.subr.mxu0 0.0
  %811 = vmatpush1.msra.mxu0 0.0
  %812 = vmatprep.mubr.f32.mxu0 0.0
  %813 = vmatmul.mubr.f32.gmra.mrb[0].mxu0 %v588
  %v814 = vpop.f32.mrb[0].mxu0
  %v815 = vadd.f32 %v690, %v814
  %v816 = vpop.f32.mrb[0].mxu0
  %817 = vmatprep.mubr.f32.mxu0 0.0
  %818 = vmatmul.mubr.f32.gmra.mrb[0].mxu0 %v591
  %v819 = vpop.f32.mrb[0].mxu0
  %v820 = vadd.f32 %v695, %v819
  %v821 = vpop.f32.mrb[0].mxu0
  %822 = vmatprep.mubr.f32.mxu0 0.0
  %823 = vmatmul.mubr.f32.gmra.mrb[0].mxu0 %v594
  %v824 = vpop.f32.mrb[0].mxu0
  %v825 = vadd.f32 %v700, %v824
  %v826 = vpop.f32.mrb[0].mxu0
  %827 = vmatprep.mubr.f32.mxu0 0.0
  %828 = vmatmul.mubr.f32.gmra.mrb[0].mxu0 %v597
  %v829 = vpop.f32.mrb[0].mxu0
  %v830 = vadd.f32 %v705, %v829
  %v831 = vpop.f32.mrb[0].mxu0
  %832 = vmatprep.mubr.f32.mxu0 0.0
  %833 = vmatmul.mubr.f32.gmra.mrb[0].mxu0 %v600
  %v834 = vpop.f32.mrb[0].mxu0
  %v835 = vadd.f32 %v710, %v834
  %v836 = vpop.f32.mrb[0].mxu0
  %837 = vmatprep.mubr.f32.mxu0 0.0
  %838 = vmatmul.mubr.f32.gmra.mrb[0].mxu0 %v603
  %v839 = vpop.f32.mrb[0].mxu0
  %v840 = vadd.f32 %v715, %v839
  %v841 = vpop.f32.mrb[0].mxu0
  %842 = vmatprep.mubr.f32.mxu0 0.0
  %843 = vmatmul.mubr.f32.gmra.mrb[0].mxu0 %v606
  %v844 = vpop.f32.mrb[0].mxu0
  %v845 = vadd.f32 %v720, %v844
  %v846 = vpop.f32.mrb[0].mxu0
  %847 = vmatprep.mubr.f32.mxu0 0.0
  %848 = vmatmul.mubr.f32.gmra.mrb[0].mxu0 %v609
  %v849 = vpop.f32.mrb[0].mxu0
  %v850 = vadd.f32 %v725, %v849
  %v851 = vpop.f32.mrb[0].mxu0
  %852 = vmatprep.mubr.f32.mxu0 0.0
  %853 = vmatmul.mubr.f32.gmra.mrb[0].mxu0 %v612
  %v854 = vpop.f32.mrb[0].mxu0
  %v855 = vadd.f32 %v730, %v854
  %v856 = vpop.f32.mrb[0].mxu0
  %857 = vmatprep.mubr.f32.mxu0 0.0
  %858 = vmatmul.mubr.f32.gmra.mrb[0].mxu0 %v615
  %v859 = vpop.f32.mrb[0].mxu0
  %v860 = vadd.f32 %v735, %v859
  %v861 = vpop.f32.mrb[0].mxu0
  %862 = vmatprep.mubr.f32.mxu0 0.0
  %863 = vmatmul.mubr.f32.gmra.mrb[0].mxu0 %v618
  %v864 = vpop.f32.mrb[0].mxu0
  %v865 = vadd.f32 %v740, %v864
  %v866 = vpop.f32.mrb[0].mxu0
  %867 = vmatprep.mubr.f32.mxu0 0.0
  %868 = vmatmul.mubr.f32.gmra.mrb[0].mxu0 %v621
  %v869 = vpop.f32.mrb[0].mxu0
  %v870 = vadd.f32 %v745, %v869
  %v871 = vpop.f32.mrb[0].mxu0
  %872 = vdwg.mxu0
  %885 = vrot.lane.b32.xlu0 %v815, 126
  %v886 = vpop.permute.xlu0 %885
  %887 = vrot.lane.b32.xlu0 %v820, 126
  %v888 = vpop.permute.xlu0 %887
  %889 = vrot.lane.b32.xlu0 %v825, 126
  %v890 = vpop.permute.xlu0 %889
  %891 = vrot.lane.b32.xlu0 %v830, 126
  %v892 = vpop.permute.xlu0 %891
  %893 = vrot.lane.b32.xlu0 %v835, 126
  %v894 = vpop.permute.xlu0 %893
  %895 = vrot.lane.b32.xlu0 %v840, 126
  %v896 = vpop.permute.xlu0 %895
  %897 = vrot.lane.b32.xlu0 %v845, 126
  %v898 = vpop.permute.xlu0 %897
  %899 = vrot.lane.b32.xlu0 %v850, 126
  %v900 = vpop.permute.xlu0 %899
  %901 = vrot.lane.b32.xlu0 %v855, 126
  %v902 = vpop.permute.xlu0 %901
  %903 = vrot.lane.b32.xlu0 %v860, 126
  %v904 = vpop.permute.xlu0 %903
  %905 = vrot.lane.b32.xlu0 %v865, 126
  %v906 = vpop.permute.xlu0 %905
  %907 = vrot.lane.b32.xlu0 %v870, 126
  %v908 = vpop.permute.xlu0 %907
  %v921 = vmax.f32 %v815, %v886
  %v922 = vmax.f32 %v820, %v888
  %v923 = vmax.f32 %v825, %v890
  %v924 = vmax.f32 %v830, %v892
  %v925 = vmax.f32 %v835, %v894
  %v926 = vmax.f32 %v840, %v896
  %v927 = vmax.f32 %v845, %v898
  %v928 = vmax.f32 %v850, %v900
  %v929 = vmax.f32 %v855, %v902
  %v930 = vmax.f32 %v860, %v904
  %v931 = vmax.f32 %v865, %v906
  %v932 = vmax.f32 %v870, %v908
  %945 = vrot.lane.b32.xlu0 %v921, 124
  %v946 = vpop.permute.xlu0 %945
  %947 = vrot.lane.b32.xlu0 %v922, 124
  %v948 = vpop.permute.xlu0 %947
  %949 = vrot.lane.b32.xlu0 %v923, 124
  %v950 = vpop.permute.xlu0 %949
  %951 = vrot.lane.b32.xlu0 %v924, 124
  %v952 = vpop.permute.xlu0 %951
  %953 = vrot.lane.b32.xlu0 %v925, 124
  %v954 = vpop.permute.xlu0 %953
  %955 = vrot.lane.b32.xlu0 %v926, 124
  %v956 = vpop.permute.xlu0 %955
  %957 = vrot.lane.b32.xlu0 %v927, 124
  %v958 = vpop.permute.xlu0 %957
  %959 = vrot.lane.b32.xlu0 %v928, 124
  %v960 = vpop.permute.xlu0 %959
  %961 = vrot.lane.b32.xlu0 %v929, 124
  %v962 = vpop.permute.xlu0 %961
  %963 = vrot.lane.b32.xlu0 %v930, 124
  %v964 = vpop.permute.xlu0 %963
  %965 = vrot.lane.b32.xlu0 %v931, 124
  %v966 = vpop.permute.xlu0 %965
  %967 = vrot.lane.b32.xlu0 %v932, 124
  %v968 = vpop.permute.xlu0 %967
  %981 = vrot.lane.b32.xlu0 %v921, 120
  %v982 = vpop.permute.xlu0 %981
  %983 = vrot.lane.b32.xlu0 %v922, 120
  %v984 = vpop.permute.xlu0 %983
  %985 = vrot.lane.b32.xlu0 %v923, 120
  %v986 = vpop.permute.xlu0 %985
  %987 = vrot.lane.b32.xlu0 %v924, 120
  %v988 = vpop.permute.xlu0 %987
  %989 = vrot.lane.b32.xlu0 %v925, 120
  %v990 = vpop.permute.xlu0 %989
  %991 = vrot.lane.b32.xlu0 %v926, 120
  %v992 = vpop.permute.xlu0 %991
  %993 = vrot.lane.b32.xlu0 %v927, 120
  %v994 = vpop.permute.xlu0 %993
  %995 = vrot.lane.b32.xlu0 %v928, 120
  %v996 = vpop.permute.xlu0 %995
  %997 = vrot.lane.b32.xlu0 %v929, 120
  %v998 = vpop.permute.xlu0 %997
  %999 = vrot.lane.b32.xlu0 %v930, 120
  %v1000 = vpop.permute.xlu0 %999
  %1001 = vrot.lane.b32.xlu0 %v931, 120
  %v1002 = vpop.permute.xlu0 %1001
  %1003 = vrot.lane.b32.xlu0 %v932, 120
  %v1004 = vpop.permute.xlu0 %1003
  %1017 = vrot.lane.b32.xlu0 %v921, 116
  %v1018 = vpop.permute.xlu0 %1017
  %1019 = vrot.lane.b32.xlu0 %v922, 116
  %v1020 = vpop.permute.xlu0 %1019
  %1021 = vrot.lane.b32.xlu0 %v923, 116
  %v1022 = vpop.permute.xlu0 %1021
  %1023 = vrot.lane.b32.xlu0 %v924, 116
  %v1024 = vpop.permute.xlu0 %1023
  %1025 = vrot.lane.b32.xlu0 %v925, 116
  %v1026 = vpop.permute.xlu0 %1025
  %1027 = vrot.lane.b32.xlu0 %v926, 116
  %v1028 = vpop.permute.xlu0 %1027
  %1029 = vrot.lane.b32.xlu0 %v927, 116
  %v1030 = vpop.permute.xlu0 %1029
  %1031 = vrot.lane.b32.xlu0 %v928, 116
  %v1032 = vpop.permute.xlu0 %1031
  %1033 = vrot.lane.b32.xlu0 %v929, 116
  %v1034 = vpop.permute.xlu0 %1033
  %1035 = vrot.lane.b32.xlu0 %v930, 116
  %v1036 = vpop.permute.xlu0 %1035
  %1037 = vrot.lane.b32.xlu0 %v931, 116
  %v1038 = vpop.permute.xlu0 %1037
  %1039 = vrot.lane.b32.xlu0 %v932, 116
  %v1040 = vpop.permute.xlu0 %1039
  %1053 = vrot.lane.b32.xlu0 %v921, 112
  %v1054 = vpop.permute.xlu0 %1053
  %1055 = vrot.lane.b32.xlu0 %v922, 112
  %v1056 = vpop.permute.xlu0 %1055
  %1057 = vrot.lane.b32.xlu0 %v923, 112
  %v1058 = vpop.permute.xlu0 %1057
  %1059 = vrot.lane.b32.xlu0 %v924, 112
  %v1060 = vpop.permute.xlu0 %1059
  %1061 = vrot.lane.b32.xlu0 %v925, 112
  %v1062 = vpop.permute.xlu0 %1061
  %1063 = vrot.lane.b32.xlu0 %v926, 112
  %v1064 = vpop.permute.xlu0 %1063
  %1065 = vrot.lane.b32.xlu0 %v927, 112
  %v1066 = vpop.permute.xlu0 %1065
  %1067 = vrot.lane.b32.xlu0 %v928, 112
  %v1068 = vpop.permute.xlu0 %1067
  %1069 = vrot.lane.b32.xlu0 %v929, 112
  %v1070 = vpop.permute.xlu0 %1069
  %1071 = vrot.lane.b32.xlu0 %v930, 112
  %v1072 = vpop.permute.xlu0 %1071
  %1073 = vrot.lane.b32.xlu0 %v931, 112
  %v1074 = vpop.permute.xlu0 %1073
  %1075 = vrot.lane.b32.xlu0 %v932, 112
  %v1076 = vpop.permute.xlu0 %1075
  %1089 = vrot.lane.b32.xlu0 %v921, 108
  %v1090 = vpop.permute.xlu0 %1089
  %1091 = vrot.lane.b32.xlu0 %v922, 108
  %v1092 = vpop.permute.xlu0 %1091
  %1093 = vrot.lane.b32.xlu0 %v923, 108
  %v1094 = vpop.permute.xlu0 %1093
  %1095 = vrot.lane.b32.xlu0 %v924, 108
  %v1096 = vpop.permute.xlu0 %1095
  %1097 = vrot.lane.b32.xlu0 %v925, 108
  %v1098 = vpop.permute.xlu0 %1097
  %1099 = vrot.lane.b32.xlu0 %v926, 108
  %v1100 = vpop.permute.xlu0 %1099
  %1101 = vrot.lane.b32.xlu0 %v927, 108
  %v1102 = vpop.permute.xlu0 %1101
  %1103 = vrot.lane.b32.xlu0 %v928, 108
  %v1104 = vpop.permute.xlu0 %1103
  %1105 = vrot.lane.b32.xlu0 %v929, 108
  %v1106 = vpop.permute.xlu0 %1105
  %1107 = vrot.lane.b32.xlu0 %v930, 108
  %v1108 = vpop.permute.xlu0 %1107
  %1109 = vrot.lane.b32.xlu0 %v931, 108
  %v1110 = vpop.permute.xlu0 %1109
  %1111 = vrot.lane.b32.xlu0 %v932, 108
  %v1112 = vpop.permute.xlu0 %1111
  %vm1125 = vcmask 1046528
  %v1126 = vrot.slane %v921, 1
  %v1127 = vrot.slane %v922, 1
  %v1128 = vsel %vm1125, %v1126, %v1127
  %v1129 = vrot.slane %v923, 1
  %v1130 = vsel %vm1125, %v1127, %v1129
  %v1131 = vrot.slane %v924, 1
  %v1132 = vsel %vm1125, %v1129, %v1131
  %v1133 = vrot.slane %v925, 1
  %v1134 = vsel %vm1125, %v1131, %v1133
  %v1135 = vrot.slane %v926, 1
  %v1136 = vsel %vm1125, %v1133, %v1135
  %v1137 = vrot.slane %v927, 1
  %v1138 = vsel %vm1125, %v1135, %v1137
  %v1139 = vrot.slane %v928, 1
  %v1140 = vsel %vm1125, %v1137, %v1139
  %v1141 = vrot.slane %v929, 1
  %v1142 = vsel %vm1125, %v1139, %v1141
  %v1143 = vrot.slane %v930, 1
  %v1144 = vsel %vm1125, %v1141, %v1143
  %v1145 = vrot.slane %v931, 1
  %v1146 = vsel %vm1125, %v1143, %v1145
  %v1147 = vrot.slane %v932, 1
  %v1148 = vsel %vm1125, %v1145, %v1147
  %v1149 = vrot.slane %v946, 1
  %v1150 = vsel %vm1125, %v1147, %v1149
  %v1151 = vrot.slane %v948, 1
  %v1152 = vsel %vm1125, %v1149, %v1151
  %v1153 = vrot.slane %v950, 1
  %v1154 = vsel %vm1125, %v1151, %v1153
  %v1155 = vrot.slane %v952, 1
  %v1156 = vsel %vm1125, %v1153, %v1155
  %v1157 = vrot.slane %v954, 1
  %v1158 = vsel %vm1125, %v1155, %v1157
  %v1159 = vrot.slane %v956, 1
  %v1160 = vsel %vm1125, %v1157, %v1159
  %v1161 = vrot.slane %v958, 1
  %v1162 = vsel %vm1125, %v1159, %v1161
  %v1163 = vrot.slane %v960, 1
  %v1164 = vsel %vm1125, %v1161, %v1163
  %v1165 = vrot.slane %v962, 1
  %v1166 = vsel %vm1125, %v1163, %v1165
  %v1167 = vrot.slane %v964, 1
  %v1168 = vsel %vm1125, %v1165, %v1167
  %v1169 = vrot.slane %v966, 1
  %v1170 = vsel %vm1125, %v1167, %v1169
  %v1171 = vrot.slane %v968, 1
  %v1172 = vsel %vm1125, %v1169, %v1171
  %v1173 = vrot.slane %v982, 1
  %v1174 = vsel %vm1125, %v1171, %v1173
  %v1175 = vrot.slane %v984, 1
  %v1176 = vsel %vm1125, %v1173, %v1175
  %v1177 = vrot.slane %v986, 1
  %v1178 = vsel %vm1125, %v1175, %v1177
  %v1179 = vrot.slane %v988, 1
  %v1180 = vsel %vm1125, %v1177, %v1179
  %v1181 = vrot.slane %v990, 1
  %v1182 = vsel %vm1125, %v1179, %v1181
  %v1183 = vrot.slane %v992, 1
  %v1184 = vsel %vm1125, %v1181, %v1183
  %v1185 = vrot.slane %v994, 1
  %v1186 = vsel %vm1125, %v1183, %v1185
  %v1187 = vrot.slane %v996, 1
  %v1188 = vsel %vm1125, %v1185, %v1187
  %v1189 = vrot.slane %v998, 1
  %v1190 = vsel %vm1125, %v1187, %v1189
  %v1191 = vrot.slane %v1000, 1
  %v1192 = vsel %vm1125, %v1189, %v1191
  %v1193 = vrot.slane %v1002, 1
  %v1194 = vsel %vm1125, %v1191, %v1193
  %v1195 = vrot.slane %v1004, 1
  %v1196 = vsel %vm1125, %v1193, %v1195
  %v1197 = vrot.slane %v1018, 1
  %v1198 = vsel %vm1125, %v1195, %v1197
  %v1199 = vrot.slane %v1020, 1
  %v1200 = vsel %vm1125, %v1197, %v1199
  %v1201 = vrot.slane %v1022, 1
  %v1202 = vsel %vm1125, %v1199, %v1201
  %v1203 = vrot.slane %v1024, 1
  %v1204 = vsel %vm1125, %v1201, %v1203
  %v1205 = vrot.slane %v1026, 1
  %v1206 = vsel %vm1125, %v1203, %v1205
  %v1207 = vrot.slane %v1028, 1
  %v1208 = vsel %vm1125, %v1205, %v1207
  %v1209 = vrot.slane %v1030, 1
  %v1210 = vsel %vm1125, %v1207, %v1209
  %v1211 = vrot.slane %v1032, 1
  %v1212 = vsel %vm1125, %v1209, %v1211
  %v1213 = vrot.slane %v1034, 1
  %v1214 = vsel %vm1125, %v1211, %v1213
  %v1215 = vrot.slane %v1036, 1
  %v1216 = vsel %vm1125, %v1213, %v1215
  %v1217 = vrot.slane %v1038, 1
  %v1218 = vsel %vm1125, %v1215, %v1217
  %v1219 = vrot.slane %v1040, 1
  %v1220 = vsel %vm1125, %v1217, %v1219
  %v1221 = vrot.slane %v1054, 1
  %v1222 = vsel %vm1125, %v1219, %v1221
  %v1223 = vrot.slane %v1056, 1
  %v1224 = vsel %vm1125, %v1221, %v1223
  %v1225 = vrot.slane %v1058, 1
  %v1226 = vsel %vm1125, %v1223, %v1225
  %v1227 = vrot.slane %v1060, 1
  %v1228 = vsel %vm1125, %v1225, %v1227
  %v1229 = vrot.slane %v1062, 1
  %v1230 = vsel %vm1125, %v1227, %v1229
  %v1231 = vrot.slane %v1064, 1
  %v1232 = vsel %vm1125, %v1229, %v1231
  %v1233 = vrot.slane %v1066, 1
  %v1234 = vsel %vm1125, %v1231, %v1233
  %v1235 = vrot.slane %v1068, 1
  %v1236 = vsel %vm1125, %v1233, %v1235
  %v1237 = vrot.slane %v1070, 1
  %v1238 = vsel %vm1125, %v1235, %v1237
  %v1239 = vrot.slane %v1072, 1
  %v1240 = vsel %vm1125, %v1237, %v1239
  %v1241 = vrot.slane %v1074, 1
  %v1242 = vsel %vm1125, %v1239, %v1241
  %v1243 = vrot.slane %v1076, 1
  %v1244 = vsel %vm1125, %v1241, %v1243
  %v1245 = vrot.slane %v1090, 1
  %v1246 = vsel %vm1125, %v1243, %v1245
  %v1247 = vrot.slane %v1092, 1
  %v1248 = vsel %vm1125, %v1245, %v1247
  %v1249 = vrot.slane %v1094, 1
  %v1250 = vsel %vm1125, %v1247, %v1249
  %v1251 = vrot.slane %v1096, 1
  %v1252 = vsel %vm1125, %v1249, %v1251
  %v1253 = vrot.slane %v1098, 1
  %v1254 = vsel %vm1125, %v1251, %v1253
  %v1255 = vrot.slane %v1100, 1
  %v1256 = vsel %vm1125, %v1253, %v1255
  %v1257 = vrot.slane %v1102, 1
  %v1258 = vsel %vm1125, %v1255, %v1257
  %v1259 = vrot.slane %v1104, 1
  %v1260 = vsel %vm1125, %v1257, %v1259
  %v1261 = vrot.slane %v1106, 1
  %v1262 = vsel %vm1125, %v1259, %v1261
  %v1263 = vrot.slane %v1108, 1
  %v1264 = vsel %vm1125, %v1261, %v1263
  %v1265 = vrot.slane %v1110, 1
  %v1266 = vsel %vm1125, %v1263, %v1265
  %v1267 = vrot.slane %v1112, 1
  %v1268 = vsel %vm1125, %v1265, %v1267
  %v1341 = vmax.f32 %v921, %v1128
  %v1342 = vmax.f32 %v922, %v1130
  %v1343 = vmax.f32 %v923, %v1132
  %v1344 = vmax.f32 %v924, %v1134
  %v1345 = vmax.f32 %v925, %v1136
  %v1346 = vmax.f32 %v926, %v1138
  %v1347 = vmax.f32 %v927, %v1140
  %v1348 = vmax.f32 %v928, %v1142
  %v1349 = vmax.f32 %v929, %v1144
  %v1350 = vmax.f32 %v930, %v1146
  %v1351 = vmax.f32 %v931, %v1148
  %v1352 = vmax.f32 %v932, %v1150
  %v1353 = vmax.f32 %v946, %v1152
  %v1354 = vmax.f32 %v948, %v1154
  %v1355 = vmax.f32 %v950, %v1156
  %v1356 = vmax.f32 %v952, %v1158
  %v1357 = vmax.f32 %v954, %v1160
  %v1358 = vmax.f32 %v956, %v1162
  %v1359 = vmax.f32 %v958, %v1164
  %v1360 = vmax.f32 %v960, %v1166
  %v1361 = vmax.f32 %v962, %v1168
  %v1362 = vmax.f32 %v964, %v1170
  %v1363 = vmax.f32 %v966, %v1172
  %v1364 = vmax.f32 %v968, %v1174
  %v1365 = vmax.f32 %v982, %v1176
  %v1366 = vmax.f32 %v984, %v1178
  %v1367 = vmax.f32 %v986, %v1180
  %v1368 = vmax.f32 %v988, %v1182
  %v1369 = vmax.f32 %v990, %v1184
  %v1370 = vmax.f32 %v992, %v1186
  %v1371 = vmax.f32 %v994, %v1188
  %v1372 = vmax.f32 %v996, %v1190
  %v1373 = vmax.f32 %v998, %v1192
  %v1374 = vmax.f32 %v1000, %v1194
  %v1375 = vmax.f32 %v1002, %v1196
  %v1376 = vmax.f32 %v1004, %v1198
  %v1377 = vmax.f32 %v1018, %v1200
  %v1378 = vmax.f32 %v1020, %v1202
  %v1379 = vmax.f32 %v1022, %v1204
  %v1380 = vmax.f32 %v1024, %v1206
  %v1381 = vmax.f32 %v1026, %v1208
  %v1382 = vmax.f32 %v1028, %v1210
  %v1383 = vmax.f32 %v1030, %v1212
  %v1384 = vmax.f32 %v1032, %v1214
  %v1385 = vmax.f32 %v1034, %v1216
  %v1386 = vmax.f32 %v1036, %v1218
  %v1387 = vmax.f32 %v1038, %v1220
  %v1388 = vmax.f32 %v1040, %v1222
  %v1389 = vmax.f32 %v1054, %v1224
  %v1390 = vmax.f32 %v1056, %v1226
  %v1391 = vmax.f32 %v1058, %v1228
  %v1392 = vmax.f32 %v1060, %v1230
  %v1393 = vmax.f32 %v1062, %v1232
  %v1394 = vmax.f32 %v1064, %v1234
  %v1395 = vmax.f32 %v1066, %v1236
  %v1396 = vmax.f32 %v1068, %v1238
  %v1397 = vmax.f32 %v1070, %v1240
  %v1398 = vmax.f32 %v1072, %v1242
  %v1399 = vmax.f32 %v1074, %v1244
  %v1400 = vmax.f32 %v1076, %v1246
  %v1401 = vmax.f32 %v1090, %v1248
  %v1402 = vmax.f32 %v1092, %v1250
  %v1403 = vmax.f32 %v1094, %v1252
  %v1404 = vmax.f32 %v1096, %v1254
  %v1405 = vmax.f32 %v1098, %v1256
  %v1406 = vmax.f32 %v1100, %v1258
  %v1407 = vmax.f32 %v1102, %v1260
  %v1408 = vmax.f32 %v1104, %v1262
  %v1409 = vmax.f32 %v1106, %v1264
  %v1410 = vmax.f32 %v1108, %v1266
  %v1411 = vmax.f32 %v1110, %v1268
  %v1412 = vmax.f32 %v1112, %v1267
  %v1413 = vmax.f32 %v1341, 0.0
  %v1414 = vmax.f32 %v1342, 0.0
  %v1415 = vmax.f32 %v1343, 0.0
  %v1416 = vmax.f32 %v1344, 0.0
  %v1417 = vmax.f32 %v1345, 0.0
  %v1418 = vmax.f32 %v1346, 0.0
  %v1419 = vmax.f32 %v1347, 0.0
  %v1420 = vmax.f32 %v1348, 0.0
  %v1421 = vmax.f32 %v1349, 0.0
  %v1422 = vmax.f32 %v1350, 0.0
  %v1423 = vmax.f32 %v1351, 0.0
  %v1424 = vmax.f32 %v1352, 0.0
  %v1425 = vmax.f32 %v1353, 0.0
  %v1426 = vmax.f32 %v1354, 0.0
  %v1427 = vmax.f32 %v1355, 0.0
  %v1428 = vmax.f32 %v1356, 0.0
  %v1429 = vmax.f32 %v1357, 0.0
  %v1430 = vmax.f32 %v1358, 0.0
  %v1431 = vmax.f32 %v1359, 0.0
  %v1432 = vmax.f32 %v1360, 0.0
  %v1433 = vmax.f32 %v1361, 0.0
  %v1434 = vmax.f32 %v1362, 0.0
  %v1435 = vmax.f32 %v1363, 0.0
  %v1436 = vmax.f32 %v1364, 0.0
  %v1437 = vmax.f32 %v1365, 0.0
  %v1438 = vmax.f32 %v1366, 0.0
  %v1439 = vmax.f32 %v1367, 0.0
  %v1440 = vmax.f32 %v1368, 0.0
  %v1441 = vmax.f32 %v1369, 0.0
  %v1442 = vmax.f32 %v1370, 0.0
  %v1443 = vmax.f32 %v1371, 0.0
  %v1444 = vmax.f32 %v1372, 0.0
  %v1445 = vmax.f32 %v1373, 0.0
  %v1446 = vmax.f32 %v1374, 0.0
  %v1447 = vmax.f32 %v1375, 0.0
  %v1448 = vmax.f32 %v1376, 0.0
  %v1449 = vmax.f32 %v1377, 0.0
  %v1450 = vmax.f32 %v1378, 0.0
  %v1451 = vmax.f32 %v1379, 0.0
  %v1452 = vmax.f32 %v1380, 0.0
  %v1453 = vmax.f32 %v1381, 0.0
  %v1454 = vmax.f32 %v1382, 0.0
  %v1455 = vmax.f32 %v1383, 0.0
  %v1456 = vmax.f32 %v1384, 0.0
  %v1457 = vmax.f32 %v1385, 0.0
  %v1458 = vmax.f32 %v1386, 0.0
  %v1459 = vmax.f32 %v1387, 0.0
  %v1460 = vmax.f32 %v1388, 0.0
  %v1461 = vmax.f32 %v1389, 0.0
  %v1462 = vmax.f32 %v1390, 0.0
  %v1463 = vmax.f32 %v1391, 0.0
  %v1464 = vmax.f32 %v1392, 0.0
  %v1465 = vmax.f32 %v1393, 0.0
  %v1466 = vmax.f32 %v1394, 0.0
  %v1467 = vmax.f32 %v1395, 0.0
  %v1468 = vmax.f32 %v1396, 0.0
  %v1469 = vmax.f32 %v1397, 0.0
  %v1470 = vmax.f32 %v1398, 0.0
  %v1471 = vmax.f32 %v1399, 0.0
  %v1472 = vmax.f32 %v1400, 0.0
  %v1473 = vmax.f32 %v1401, 0.0
  %v1474 = vmax.f32 %v1402, 0.0
  %v1475 = vmax.f32 %v1403, 0.0
  %v1476 = vmax.f32 %v1404, 0.0
  %v1477 = vmax.f32 %v1405, 0.0
  %v1478 = vmax.f32 %v1406, 0.0
  %v1479 = vmax.f32 %v1407, 0.0
  %v1480 = vmax.f32 %v1408, 0.0
  %v1481 = vmax.f32 %v1409, 0.0
  %v1482 = vmax.f32 %v1410, 0.0
  %v1483 = vmax.f32 %v1411, 0.0
  %v1484 = vmax.f32 %v1412, 0.0
  %v1485 = vld [vmem:[%s5] sm:$0xff]
  %v1486 = vld [vmem:[%s5 + $0x8] sm:$0xff]
  %v1487 = vld [vmem:[%s5 + $0x10] sm:$0xff]
  %v1488 = vld [vmem:[%s5 + $0x18] sm:$0xff]
  %v1489 = vld [vmem:[%s5 + $0x20] sm:$0xff]
  %v1490 = vld [vmem:[%s5 + $0x28] sm:$0x3]
  %v1491 = vld [vmem:[%s5 + $0x30] sm:$0x3]
  %v1492 = vld [vmem:[%s5 + $0x38] sm:$0x3]
  %v1493 = vld [vmem:[%s5 + $0x40] sm:$0x3]
  %v1494 = vld [vmem:[%s5 + $0x48] sm:$0x3]
  %v1495 = vld [vmem:[%s6] sm:$0xff]
  %v1496 = vld [vmem:[%s6 + $0x8] sm:$0x3]
  %1498 = vset.pattern.permute.xlu0 0
  %1499 = vperm.xlu0 %1498, %v1495
  %v1500 = vpop.permute.xlu0 %1499
  %1503 = vset.pattern.permute.xlu0 0
  %1504 = vperm.xlu0 %1503, %v1496
  %v1505 = vpop.permute.xlu0 %1504
  %vm1507 = vcmask 515072
  %v1509 = vsel %vm1507, %v1489, 0
  %v1512 = vsel %vm1507, %v1494, 0
  %v1515 = vsel %vm1125, %v1484, 0
  %1517 = vmatprep.subr.mxu0 0.0
  %1518 = vmatpush1.msra.mxu0 %v1413
  %1519 = vmatprep.subr.mxu0 0.0
  %1520 = vmatpush1.msra.mxu0 %v1414
  %1521 = vmatprep.subr.mxu0 0.0
  %1522 = vmatpush1.msra.mxu0 %v1415
  %1523 = vmatprep.subr.mxu0 0.0
  %1524 = vmatpush1.msra.mxu0 %v1416
  %1525 = vmatprep.subr.mxu0 0.0
  %1526 = vmatpush1.msra.mxu0 %v1417
  %1527 = vmatprep.subr.mxu0 0.0
  %1528 = vmatpush1.msra.mxu0 %v1418
  %1529 = vmatprep.subr.mxu0 0.0
  %1530 = vmatpush1.msra.mxu0 %v1419
  %1531 = vmatprep.subr.mxu0 0.0
  %1532 = vmatpush1.msra.mxu0 %v1420
  %1533 = vmatprep.subr.mxu0 0.0
  %1534 = vmatpush1.msra.mxu0 %v1421
  %1535 = vmatprep.subr.mxu0 0.0
  %1536 = vmatpush1.msra.mxu0 %v1422
  %1537 = vmatprep.subr.mxu0 0.0
  %1538 = vmatpush1.msra.mxu0 %v1423
  %1539 = vmatprep.subr.mxu0 0.0
  %1540 = vmatpush1.msra.mxu0 %v1424
  %1541 = vmatprep.subr.mxu0 0.0
  %1542 = vmatpush1.msra.mxu0 %v1425
  %1543 = vmatprep.subr.mxu0 0.0
  %1544 = vmatpush1.msra.mxu0 %v1426
  %1545 = vmatprep.subr.mxu0 0.0
  %1546 = vmatpush1.msra.mxu0 %v1427
  %1547 = vmatprep.subr.mxu0 0.0
  %1548 = vmatpush1.msra.mxu0 %v1428
  %1549 = vmatprep.subr.mxu0 0.0
  %1550 = vmatpush1.msra.mxu0 %v1429
  %1551 = vmatprep.subr.mxu0 0.0
  %1552 = vmatpush1.msra.mxu0 %v1430
  %1553 = vmatprep.subr.mxu0 0.0
  %1554 = vmatpush1.msra.mxu0 %v1431
  %1555 = vmatprep.subr.mxu0 0.0
  %1556 = vmatpush1.msra.mxu0 %v1432
  %1557 = vmatprep.subr.mxu0 0.0
  %1558 = vmatpush1.msra.mxu0 %v1433
  %1559 = vmatprep.subr.mxu0 0.0
  %1560 = vmatpush1.msra.mxu0 %v1434
  %1561 = vmatprep.subr.mxu0 0.0
  %1562 = vmatpush1.msra.mxu0 %v1435
  %1563 = vmatprep.subr.mxu0 0.0
  %1564 = vmatpush1.msra.mxu0 %v1436
  %1565 = vmatprep.subr.mxu0 0.0
  %1566 = vmatpush1.msra.mxu0 %v1437
  %1567 = vmatprep.subr.mxu0 0.0
  %1568 = vmatpush1.msra.mxu0 %v1438
  %1569 = vmatprep.subr.mxu0 0.0
  %1570 = vmatpush1.msra.mxu0 %v1439
  %1571 = vmatprep.subr.mxu0 0.0
  %1572 = vmatpush1.msra.mxu0 %v1440
  %1573 = vmatprep.subr.mxu0 0.0
  %1574 = vmatpush1.msra.mxu0 %v1441
  %1575 = vmatprep.subr.mxu0 0.0
  %1576 = vmatpush1.msra.mxu0 %v1442
  %1577 = vmatprep.subr.mxu0 0.0
  %1578 = vmatpush1.msra.mxu0 %v1443
  %1579 = vmatprep.subr.mxu0 0.0
  %1580 = vmatpush1.msra.mxu0 %v1444
  %1581 = vmatprep.mubr.f32.mxu0 %v1486
  %1582 = vmatmul.mubr.f32.gmra.mrb[0].mxu0 %v1485
  %v1583 = vpop.f32.mrb[0].mxu0
  %v1584 = vadd.f32 %v1500, %v1583
  %v1585 = vpop.f32.mrb[0].mxu0
  %1586 = vmatprep.mubr.f32.mxu0 %v1491
  %1587 = vmatmul.mubr.f32.gmra.mrb[0].mxu0 %v1490
  %v1588 = vpop.f32.mrb[0].mxu0
  %v1589 = vadd.f32 %v1505, %v1588
  %v1590 = vpop.f32.mrb[0].mxu0
  %1591 = vdwg.mxu0
  %1592 = vmatprep.subr.mxu0 0.0
  %1593 = vmatpush1.msra.mxu0 %v1445
  %1594 = vmatprep.subr.mxu0 0.0
  %1595 = vmatpush1.msra.mxu0 %v1446
  %1596 = vmatprep.subr.mxu0 0.0
  %1597 = vmatpush1.msra.mxu0 %v1447
  %1598 = vmatprep.subr.mxu0 0.0
  %1599 = vmatpush1.msra.mxu0 %v1448
  %1600 = vmatprep.subr.mxu0 0.0
  %1601 = vmatpush1.msra.mxu0 %v1449
  %1602 = vmatprep.subr.mxu0 0.0
  %1603 = vmatpush1.msra.mxu0 %v1450
  %1604 = vmatprep.subr.mxu0 0.0
  %1605 = vmatpush1.msra.mxu0 %v1451
  %1606 = vmatprep.subr.mxu0 0.0
  %1607 = vmatpush1.msra.mxu0 %v1452
  %1608 = vmatprep.subr.mxu0 0.0
  %1609 = vmatpush1.msra.mxu0 %v1453
  %1610 = vmatprep.subr.mxu0 0.0
  %1611 = vmatpush1.msra.mxu0 %v1454
  %1612 = vmatprep.subr.mxu0 0.0
  %1613 = vmatpush1.msra.mxu0 %v1455
  %1614 = vmatprep.subr.mxu0 0.0
  %1615 = vmatpush1.msra.mxu0 %v1456
  %1616 = vmatprep.subr.mxu0 0.0
  %1617 = vmatpush1.msra.mxu0 %v1457
  %1618 = vmatprep.subr.mxu0 0.0
  %1619 = vmatpush1.msra.mxu0 %v1458
  %1620 = vmatprep.subr.mxu0 0.0
  %1621 = vmatpush1.msra.mxu0 %v1459
  %1622 = vmatprep.subr.mxu0 0.0
  %1623 = vmatpush1.msra.mxu0 %v1460
  %1624 = vmatprep.subr.mxu0 0.0
  %1625 = vmatpush1.msra.mxu0 %v1461
  %1626 = vmatprep.subr.mxu0 0.0
  %1627 = vmatpush1.msra.mxu0 %v1462
  %1628 = vmatprep.subr.mxu0 0.0
  %1629 = vmatpush1.msra.mxu0 %v1463
  %1630 = vmatprep.subr.mxu0 0.0
  %1631 = vmatpush1.msra.mxu0 %v1464
  %1632 = vmatprep.subr.mxu0 0.0
  %1633 = vmatpush1.msra.mxu0 %v1465
  %1634 = vmatprep.subr.mxu0 0.0
  %1635 = vmatpush1.msra.mxu0 %v1466
  %1636 = vmatprep.subr.mxu0 0.0
  %1637 = vmatpush1.msra.mxu0 %v1467
  %1638 = vmatprep.subr.mxu0 0.0
  %1639 = vmatpush1.msra.mxu0 %v1468
  %1640 = vmatprep.subr.mxu0 0.0
  %1641 = vmatpush1.msra.mxu0 %v1469
  %1642 = vmatprep.subr.mxu0 0.0
  %1643 = vmatpush1.msra.mxu0 %v1470
  %1644 = vmatprep.subr.mxu0 0.0
  %1645 = vmatpush1.msra.mxu0 %v1471
  %1646 = vmatprep.subr.mxu0 0.0
  %1647 = vmatpush1.msra.mxu0 %v1472
  %1648 = vmatprep.subr.mxu0 0.0
  %1649 = vmatpush1.msra.mxu0 %v1473
  %1650 = vmatprep.subr.mxu0 0.0
  %1651 = vmatpush1.msra.mxu0 %v1474
  %1652 = vmatprep.subr.mxu0 0.0
  %1653 = vmatpush1.msra.mxu0 %v1475
  %1654 = vmatprep.subr.mxu0 0.0
  %1655 = vmatpush1.msra.mxu0 %v1476
  %1656 = vmatprep.mubr.f32.mxu0 %v1488
  %1657 = vmatmul.mubr.f32.gmra.mrb[0].mxu0 %v1487
  %v1658 = vpop.f32.mrb[0].mxu0
  %v1659 = vadd.f32 %v1584, %v1658
  %v1660 = vpop.f32.mrb[0].mxu0
  %1661 = vmatprep.mubr.f32.mxu0 %v1493
  %1662 = vmatmul.mubr.f32.gmra.mrb[0].mxu0 %v1492
  %v1663 = vpop.f32.mrb[0].mxu0
  %v1664 = vadd.f32 %v1589, %v1663
  %v1665 = vpop.f32.mrb[0].mxu0
  %1666 = vdwg.mxu0
  %1667 = vmatprep.subr.mxu0 0.0
  %1668 = vmatpush1.msra.mxu0 %v1477
  %1669 = vmatprep.subr.mxu0 0.0
  %1670 = vmatpush1.msra.mxu0 %v1478
  %1671 = vmatprep.subr.mxu0 0.0
  %1672 = vmatpush1.msra.mxu0 %v1479
  %1673 = vmatprep.subr.mxu0 0.0
  %1674 = vmatpush1.msra.mxu0 %v1480
  %1675 = vmatprep.subr.mxu0 0.0
  %1676 = vmatpush1.msra.mxu0 %v1481
  %1677 = vmatprep.subr.mxu0 0.0
  %1678 = vmatpush1.msra.mxu0 %v1482
  %1679 = vmatprep.subr.mxu0 0.0
  %1680 = vmatpush1.msra.mxu0 %v1483
  %1681 = vmatprep.subr.mxu0 0.0
  %1682 = vmatpush1.msra.mxu0 %v1515
  %1683 = vmatprep.subr.mxu0 0.0
  %1684 = vmatpush1.msra.mxu0 0.0
  %1685 = vmatprep.subr.mxu0 0.0
  %1686 = vmatpush1.msra.mxu0 0.0
  %1687 = vmatprep.subr.mxu0 0.0
  %1688 = vmatpush1.msra.mxu0 0.0
  %1689 = vmatprep.subr.mxu0 0.0
  %1690 = vmatpush1.msra.mxu0 0.0
  %1691 = vmatprep.subr.mxu0 0.0
  %1692 = vmatpush1.msra.mxu0 0.0
  %1693 = vmatprep.subr.mxu0 0.0
  %1694 = vmatpush1.msra.mxu0 0.0
  %1695 = vmatprep.subr.mxu0 0.0
  %1696 = vmatpush1.msra.mxu0 0.0
  %1697 = vmatprep.subr.mxu0 0.0
  %1698 = vmatpush1.msra.mxu0 0.0
  %1699 = vmatprep.subr.mxu0 0.0
  %1700 = vmatpush1.msra.mxu0 0.0
  %1701 = vmatprep.subr.mxu0 0.0
  %1702 = vmatpush1.msra.mxu0 0.0
  %1703 = vmatprep.subr.mxu0 0.0
  %1704 = vmatpush1.msra.mxu0 0.0
  %1705 = vmatprep.subr.mxu0 0.0
  %1706 = vmatpush1.msra.mxu0 0.0
  %1707 = vmatprep.subr.mxu0 0.0
  %1708 = vmatpush1.msra.mxu0 0.0
  %1709 = vmatprep.subr.mxu0 0.0
  %1710 = vmatpush1.msra.mxu0 0.0
  %1711 = vmatprep.subr.mxu0 0.0
  %1712 = vmatpush1.msra.mxu0 0.0
  %1713 = vmatprep.subr.mxu0 0.0
  %1714 = vmatpush1.msra.mxu0 0.0
  %1715 = vmatprep.subr.mxu0 0.0
  %1716 = vmatpush1.msra.mxu0 0.0
  %1717 = vmatprep.subr.mxu0 0.0
  %1718 = vmatpush1.msra.mxu0 0.0
  %1719 = vmatprep.subr.mxu0 0.0
  %1720 = vmatpush1.msra.mxu0 0.0
  %1721 = vmatprep.subr.mxu0 0.0
  %1722 = vmatpush1.msra.mxu0 0.0
  %1723 = vmatprep.subr.mxu0 0.0
  %1724 = vmatpush1.msra.mxu0 0.0
  %1725 = vmatprep.subr.mxu0 0.0
  %1726 = vmatpush1.msra.mxu0 0.0
  %1727 = vmatprep.subr.mxu0 0.0
  %1728 = vmatpush1.msra.mxu0 0.0
  %1729 = vmatprep.subr.mxu0 0.0
  %1730 = vmatpush1.msra.mxu0 0.0
  %1731 = vmatprep.mubr.f32.mxu0 0.0
  %1732 = vmatmul.mubr.f32.gmra.mrb[0].mxu0 %v1509
  %v1733 = vpop.f32.mrb[0].mxu0
  %v1734 = vadd.f32 %v1659, %v1733
  %v1735 = vpop.f32.mrb[0].mxu0
  %1736 = vmatprep.mubr.f32.mxu0 0.0
  %1737 = vmatmul.mubr.f32.gmra.mrb[0].mxu0 %v1512
  %v1738 = vpop.f32.mrb[0].mxu0
  %v1739 = vadd.f32 %v1664, %v1738
  %v1740 = vpop.f32.mrb[0].mxu0
  %1741 = vdwg.mxu0
  %vm1742 = vcmask 15360
  %v1743 = vsel %vm1742, %v1734, -inf
  %vm1744 = vcmask 9216
  %v1745 = vsel %vm1744, %v1739, -inf
  %v1746 = vmax.f32 %v1743, %v1745
  %v1747 = vrot.slane %v1746, 4
  %v1748 = vmax.f32 %v1746, %v1747
  %v1749 = vrot.slane %v1748, 2
  %v1750 = vmax.f32 %v1748, %v1749
  %v1751 = vrot.slane %v1750, 1
  %v1752 = vmax.f32 %v1750, %v1751
  %v1753 = vsub.f32 %v1734, %v1752
  %v1754 = vsub.f32 %v1739, %v1752
  %v1755 = vmul.f32 %v1753, 1.442695
  %v1756 = vpow.pop %v1755
  %v1757 = vmul.f32 %v1754, 1.442695
  %v1758 = vpow.pop %v1757
  %v1759 = vsel %vm1742, %v1756, 0.0
  %v1760 = vsel %vm1744, %v1758, 0.0
  %v1761 = vadd.f32 %v1759, %v1760
  %v1762 = vrot.slane %v1761, 4
  %v1763 = vadd.f32 %v1761, %v1762
  %v1764 = vrot.slane %v1763, 2
  %v1765 = vadd.f32 %v1763, %v1764
  %v1766 = vrot.slane %v1765, 1
  %v1767 = vadd.f32 %v1765, %v1766
  %v1768 = vlog2.pop %v1767
  %v1769 = vmul.f32 %v1768, 0.6931472
  %v1770 = vsub.f32 %v1753, %v1769
  %v1771 = vsub.f32 %v1754, %v1769
  %1772 = vst.msk [vmem:[%s7] sm:$0xff] %vm1742, %v1770
  %1773 = vst.msk [vmem:[%s7 + $0x8] sm:$0x3] %vm1744, %v1771
  // Predicated region
  $region30: #{net_forward.1} parent=0 // pred_check
    _
  $region31: #{net_forward.1} parent=0 // pred_check_branch
    %1775 = sbr.rel (0) target = $region33
  $region32: #{net_forward.1} parent=0 // pred_region
    _
  $region33: #{net_forward.1} parent=0 // pred_fallthru
    _
  // Predicated region
  $region34: #{net_forward.1} parent=0 // pred_check
    _
  $region35: #{net_forward.1} parent=0 // pred_check_branch
    %1777 = sbr.rel (0) target = $region37
  $region36: #{net_forward.1} parent=0 // pred_region
    _
  $region37: #{net_forward.1} parent=0 // pred_fallthru
    _

</llo_original>
